<compile_context>
chip_gen: v7x
topology: tpu7x:2x2x1
jax: 0.10.0
libtpu: 0.0.40
codegen_flags: <defaults>
</compile_context>

<pallas_src>
import functools
import math

import jax
import jax.numpy as jnp
from jax.experimental import pallas as pl
from jax.experimental.pallas import tpu as pltpu


# ---------------------------------------------------------------------------
# helpers
# ---------------------------------------------------------------------------

def _round_up(x, m):
    return ((x + m - 1) // m) * m


def _pad_gate_cols(w, hidden, hidden_p):
    """(rows, 3*hidden) -> (rows, 3*hidden_p): each [r|z|n] gate block starts on
    a 128-lane boundary; padded columns are zero."""
    rows = w.shape[0]
    out = jnp.zeros((rows, 3 * hidden_p), w.dtype)
    for g in range(3):
        out = out.at[:, g * hidden_p:g * hidden_p + hidden].set(
            w[:, g * hidden:(g + 1) * hidden])
    return out


def _pad_rows(w, rows_p):
    pad = rows_p - w.shape[0]
    return jnp.pad(w, ((0, pad), (0, 0))) if pad else w


# ---------------------------------------------------------------------------
# kernel 1: hoisted input projection (fully parallel matmul)
# ---------------------------------------------------------------------------

def _input_proj_kernel(x_ref, w_ih_ref, b_fold_ref, gi_ref):
    # x_ref: (TM, E) bf16 rows = flattened (time, batch); gi_ref: (TM, 3Hp) f32
    gi_ref[...] = (
        jnp.dot(x_ref[...], w_ih_ref[...], preferred_element_type=jnp.float32)
        + b_fold_ref[...])


# ---------------------------------------------------------------------------
# kernel 2: GRU recurrence (only h @ W_hh + elementwise gates on the serial path)
# ---------------------------------------------------------------------------

def _gru_recurrence_kernel(gi_ref, len_ref, w_hh_ref, b_hn_ref,
                           h_last_ref, h_ref):
    tc = pl.program_id(1)
    n_tc = pl.num_programs(1)
    t_chunk = gi_ref.shape[0]          # Tc (static)
    hp = h_ref.shape[-1]               # Hp (static, multiple of 128)

    @pl.when(tc == 0)
    def _():                           # re-init per batch tile
        h_ref[...] = jnp.zeros_like(h_ref)

    lens = len_ref[...]                # (BT, 1) int32 (loaded once per chunk)
    w_hh = w_hh_ref[...]               # (Hp, 3Hp) bf16
    b_hn = b_hn_ref[...]               # (1, Hp) f32
    t0 = tc * t_chunk

    def step(tt, h):
        gi = gi_ref[tt]                # (BT, 3Hp) f32 — b_ih, b_hr, b_hz pre-folded
        gh = jnp.dot(h.astype(w_hh.dtype), w_hh,
                     preferred_element_type=jnp.float32)
        r = jax.nn.sigmoid(gi[:, 0:hp] + gh[:, 0:hp])
        z = jax.nn.sigmoid(gi[:, hp:2 * hp] + gh[:, hp:2 * hp])
        n = jnp.tanh(gi[:, 2 * hp:3 * hp] + r * (gh[:, 2 * hp:3 * hp] + b_hn))
        h_new = (1.0 - z) * n + z * h
        # pack_padded_sequence semantics: padded steps never update h, so with
        # pooling='last' we end up with h at each sequence's last valid step.
        return jnp.where(lens > (t0 + tt), h_new, h)

    h_ref[...] = jax.lax.fori_loop(0, t_chunk, step, h_ref[...], unroll=True)

    @pl.when(tc == n_tc - 1)
    def _():
        h_last_ref[...] = h_ref[...]   # lane-dense (BT, Hp) output


# ---------------------------------------------------------------------------
# kernel 3: classification decoder + cross-entropy (split off the recurrence)
# ---------------------------------------------------------------------------

def _classifier_loss_kernel(h_ref, w_cls_ref, b_cls_ref, label_ref,
                            logits_ref, loss_ref, *, n_rows, n_cols):
    h = h_ref[...]                                             # (Bp, Hp) f32
    logits = jnp.dot(h.astype(w_cls_ref.dtype), w_cls_ref[...],
                     preferred_element_type=jnp.float32) + b_cls_ref[...]
    logits_ref[...] = logits                                   # (Bp, Cp) lane-dense

    col = jax.lax.broadcasted_iota(jnp.int32, logits.shape, 1)
    col_ok = col < n_cols
    masked = jnp.where(col_ok, logits, -1e30)
    m = jnp.max(masked, axis=-1, keepdims=True)
    lse = m + jnp.log(jnp.sum(jnp.where(col_ok, jnp.exp(masked - m), 0.0),
                              axis=-1, keepdims=True))         # (Bp, 1)
    picked = jnp.sum(jnp.where(col == label_ref[...], logits, 0.0),
                     axis=-1, keepdims=True)                   # (Bp, 1)
    row_ok = jax.lax.broadcasted_iota(jnp.int32, lse.shape, 0) < n_rows
    loss_ref[0, 0] = jnp.sum(jnp.where(row_ok, lse - picked, 0.0)) / float(n_rows)


# ---------------------------------------------------------------------------
# wrapper
# ---------------------------------------------------------------------------

def multitask_classification_forward(tokens, lengths, labels, params,
                                     compute_dtype=jnp.bfloat16):
    """Forward pass for MultitaskModel with task_type='classification'.

    tokens:  (B, T) int32
    lengths: (B,)   int32  (true sequence lengths, >= 1)
    labels:  (B,)   int32
    returns: (loss scalar f32, logits (B, C) f32)
    """
    B, T = tokens.shape
    E = params["embedding"].shape[1]
    H = params["w_hh_t"].shape[0]
    C = params["w_cls_t"].shape[1]
    f32 = jnp.float32

    # ---- lane/sublane aligned sizes --------------------------------------
    Hp = _round_up(H, 128)            # lane-aligned gate slices
    Cp = _round_up(C, 128)            # lane-dense logits slab
    Bp = _round_up(B, 8)              # f32 sublane multiple
    if Bp > 128:
        Bp = _round_up(Bp, 128)
    BT = min(Bp, 128)                 # batch tile -> "parallel" grid axis (v7x 2 TCs)
    Tc = min(T, 32)                   # time steps per sequential grid step
    Tp = _round_up(T, Tc)
    n_bt, n_tc = Bp // BT, Tp // Tc

    # ---- padded weights (bf16 MXU operands; biases stay f32) -------------
    # (in a real model this padding/cast would be done once and cached)
    w_ih_p = _pad_gate_cols(params["w_ih_t"], H, Hp).astype(compute_dtype)   # (E, 3Hp)
    w_hh_p = _pad_rows(_pad_gate_cols(params["w_hh_t"], H, Hp),
                       Hp).astype(compute_dtype)                             # (Hp, 3Hp)
    # fold b_ih (all gates) + b_hh (r, z gates) into the input projection;
    # only the n-gate hidden bias remains inside the recurrence.
    b_hh_rz = params["b_hh"].at[:, 2 * H:].set(0.0)
    b_fold = (_pad_gate_cols(params["b_ih"], H, Hp)
              + _pad_gate_cols(b_hh_rz, H, Hp)).astype(f32)                  # (1, 3Hp)
    b_hn_p = jnp.zeros((1, Hp), f32).at[:, :H].set(params["b_hh"][:, 2 * H:])
    w_cls_p = _pad_rows(
        jnp.zeros((H, Cp), f32).at[:, :C].set(params["w_cls_t"]),
        Hp).astype(compute_dtype)                                            # (Hp, Cp)
    b_cls_p = jnp.zeros((1, Cp), f32).at[:, :C].set(params["b_cls"])         # (1, Cp)

    # ---- embedding lookup, gathered directly into time-major layout ------
    # (only the tiny int token matrix is transposed; no activation transpose)
    tok_tm = jnp.zeros((Tp, Bp), jnp.int32).at[:T, :B].set(jnp.transpose(tokens))
    x_tm = jnp.take(params["embedding"], tok_tm, axis=0).astype(compute_dtype)
    x2d = x_tm.reshape(Tp * Bp, E)                       # contiguous (free) reshape

    len_p = jnp.zeros((Bp, 1), jnp.int32).at[:B, 0].set(lengths.astype(jnp.int32))
    lbl_p = jnp.zeros((Bp, 1), jnp.int32).at[:B, 0].set(labels.astype(jnp.int32))

    # ---- 1) hoisted input projection: one big parallel MXU matmul --------
    TM = Tc * Bp
    gi2d = pl.pallas_call(
        _input_proj_kernel,
        grid=(Tp * Bp // TM,),
        in_specs=[
            pl.BlockSpec((TM, E), lambda i: (i, 0)),
            pl.BlockSpec((E, 3 * Hp), lambda i: (0, 0)),
            pl.BlockSpec((1, 3 * Hp), lambda i: (0, 0)),
        ],
        out_specs=pl.BlockSpec((TM, 3 * Hp), lambda i: (i, 0)),
        out_shape=jax.ShapeDtypeStruct((Tp * Bp, 3 * Hp), f32),
        compiler_params=pltpu.CompilerParams(
            dimension_semantics=("parallel",),
            vmem_limit_bytes=32 * 1024 * 1024),
    )(x2d, w_ih_p, b_fold)
    gi = gi2d.reshape(Tp, Bp, 3 * Hp)                    # contiguous (free) reshape

    # ---- 2) GRU recurrence: batch-parallel x time-sequential grid --------
    h_last = pl.pallas_call(
        _gru_recurrence_kernel,
        grid=(n_bt, n_tc),
        in_specs=[
            pl.BlockSpec((Tc, BT, 3 * Hp), lambda bt, tc: (tc, bt, 0)),
            pl.BlockSpec((BT, 1), lambda bt, tc: (bt, 0)),
            pl.BlockSpec((Hp, 3 * Hp), lambda bt, tc: (0, 0)),
            pl.BlockSpec((1, Hp), lambda bt, tc: (0, 0)),
        ],
        out_specs=pl.BlockSpec((BT, Hp), lambda bt, tc: (bt, 0)),
        out_shape=jax.ShapeDtypeStruct((Bp, Hp), f32),
        scratch_shapes=[pltpu.VMEM((BT, Hp), f32)],      # f32 hidden-state carry
        compiler_params=pltpu.CompilerParams(
            dimension_semantics=("parallel", "arbitrary"),
            vmem_limit_bytes=32 * 1024 * 1024),
    )(gi, len_p, w_hh_p, b_hn_p)

    # ---- 3) classifier head + cross-entropy (tiny, separate call) --------
    logits_p, loss = pl.pallas_call(
        functools.partial(_classifier_loss_kernel, n_rows=B, n_cols=C),
        grid=(1,),
        in_specs=[
            pl.BlockSpec((Bp, Hp), lambda i: (0, 0)),
            pl.BlockSpec((Hp, Cp), lambda i: (0, 0)),
            pl.BlockSpec((1, Cp), lambda i: (0, 0)),
            pl.BlockSpec((Bp, 1), lambda i: (0, 0)),
        ],
        out_specs=[
            pl.BlockSpec((Bp, Cp), lambda i: (0, 0)),
            pl.BlockSpec(memory_space=pltpu.MemorySpace.SMEM),   # scalar loss
        ],
        out_shape=[
            jax.ShapeDtypeStruct((Bp, Cp), f32),
            jax.ShapeDtypeStruct((1, 1), f32),
        ],
    )(h_last, w_cls_p, b_cls_p, lbl_p)

    return loss[0, 0], logits_p[:B, :C]


# ---------------------------------------------------------------------------
# parameter init (mirrors the PyTorch module's __init__) and pure-JAX reference
# ---------------------------------------------------------------------------

def init_params(key, vocab_size, emb_dim, hidden_dim, num_classes):
    ks = jax.random.split(key, 8)
    k_gru = 1.0 / math.sqrt(hidden_dim)
    k_lin = 1.0 / math.sqrt(hidden_dim)
    u = lambda k, shape, lim: jax.random.uniform(k, shape, jnp.float32, -lim, lim)
    return {
        # nn.Embedding(...).weight.data.uniform_(-0.1, 0.1)
        "embedding": u(ks[0], (vocab_size, emb_dim), 0.1),
        # nn.GRU weights (stored pre-transposed; gate order [r, z, n])
        "w_ih_t": u(ks[1], (emb_dim, 3 * hidden_dim), k_gru),
        "w_hh_t": u(ks[2], (hidden_dim, 3 * hidden_dim), k_gru),
        "b_ih": u(ks[3], (1, 3 * hidden_dim), k_gru),
        "b_hh": u(ks[4], (1, 3 * hidden_dim), k_gru),
        # classification decoder: Linear(hidden_dim -> num_classes)
        "w_cls_t": u(ks[5], (hidden_dim, num_classes), k_lin),
        "b_cls": u(ks[6], (1, num_classes), k_lin),
    }


def _reference_forward(tokens, lengths, labels, params):
    emb = jnp.take(params["embedding"], tokens, axis=0)        # (B, T, E)
    B, T, _ = emb.shape
    H = params["w_hh_t"].shape[0]
    h0 = jnp.zeros((B, H), jnp.float32)

    def step(h, inputs):
        x_t, t = inputs
        gi = x_t @ params["w_ih_t"] + params["b_ih"]
        gh = h @ params["w_hh_t"] + params["b_hh"]
        r = jax.nn.sigmoid(gi[:, :H] + gh[:, :H])
        z = jax.nn.sigmoid(gi[:, H:2 * H] + gh[:, H:2 * H])
        n = jnp.tanh(gi[:, 2 * H:] + r * gh[:, 2 * H:])
        h_new = (1.0 - z) * n + z * h
        mask = (lengths > t)[:, None]
        return jnp.where(mask, h_new, h), None

    xs = (jnp.transpose(emb, (1, 0, 2)).astype(jnp.float32), jnp.arange(T))
    h_last, _ = jax.lax.scan(step, h0, xs)
    logits = h_last @ params["w_cls_t"] + params["b_cls"]
    logp = jax.nn.log_softmax(logits, axis=-1)
    loss = -jnp.mean(jnp.take_along_axis(logp, labels[:, None], axis=-1))
    return loss, logits


if __name__ == "__main__":
    B, T, E, H, V, C = 4, 8, 32, 32, 50, 3
    PAD = 0

    key = jax.random.PRNGKey(0)
    k_tok, k_len, k_lbl, k_par = jax.random.split(key, 4)

    lengths = jax.random.randint(k_len, (B,), 1, T + 1).astype(jnp.int32)
    tokens = jax.random.randint(k_tok, (B, T), 1, V).astype(jnp.int32)
    pad_mask = jnp.arange(T)[None, :] < lengths[:, None]
    tokens = jnp.where(pad_mask, tokens, PAD)
    labels = jax.random.randint(k_lbl, (B,), 0, C).astype(jnp.int32)

    params = init_params(k_par, V, E, H, C)

    fwd = jax.jit(multitask_classification_forward)
    loss, logits = fwd(tokens, lengths, labels, params)
    jax.block_until_ready((loss, logits))

    ref_loss, ref_logits = _reference_forward(tokens, lengths, labels, params)
    assert jnp.allclose(logits, ref_logits, atol=2e-2, rtol=2e-2), "logits mismatch"
    assert jnp.allclose(loss, ref_loss, atol=2e-2, rtol=2e-2), "loss mismatch"

    print("KERNEL_OK")
</pallas_src>

<mosaic_0001>
module attributes {stable_mosaic.version = 11 : i64} {
  func.func @_input_proj_kernel(%arg0: i32, %arg1: memref<64x32xbf16, #tpu.memory_space<vmem>>, %arg2: memref<32x384xbf16, #tpu.memory_space<vmem>>, %arg3: memref<1x384xf32, #tpu.memory_space<vmem>>, %arg4: memref<64x384xf32, #tpu.memory_space<vmem>>) attributes {dimension_semantics = [#tpu.dimension_semantics<parallel>], iteration_bounds = array<i64: 1>, scalar_prefetch = 0 : i64, scratch_operands = 0 : i64, tpu.core_type = #tpu.core_type<tc>, window_params = [{transform_indices = @transform_0, window_bounds = array<i64: 64, 32>}, {pipeline_mode = #tpu.pipeline_mode<synchronous>, transform_indices = @transform_1, window_bounds = array<i64: 32, 384>}, {pipeline_mode = #tpu.pipeline_mode<synchronous>, transform_indices = @transform_2, window_bounds = array<i64: 1, 384>}, {transform_indices = @transform_3, window_bounds = array<i64: 64, 384>}]} {
    %c0 = arith.constant 0 : index
    %c0_0 = arith.constant 0 : index
    %0 = vector.load %arg1[%c0, %c0_0] : memref<64x32xbf16, #tpu.memory_space<vmem>>, vector<64x32xbf16>
    %c0_1 = arith.constant 0 : index
    %c0_2 = arith.constant 0 : index
    %1 = vector.load %arg2[%c0_1, %c0_2] : memref<32x384xbf16, #tpu.memory_space<vmem>>, vector<32x384xbf16>
    %cst = arith.constant dense<0.000000e+00> : vector<64x384xf32>
    %2 = tpu.matmul %0, %1, %cst {dimension_numbers = #tpu.dot_dimension_numbers<[1], [0], [0], [1], [0, 0, 1, 1], [], []>} : vector<64x32xbf16>, vector<32x384xbf16>, vector<64x384xf32> -> vector<64x384xf32>
    %c0_3 = arith.constant 0 : index
    %c0_4 = arith.constant 0 : index
    %3 = vector.load %arg3[%c0_3, %c0_4] : memref<1x384xf32, #tpu.memory_space<vmem>>, vector<1x384xf32>
    %4 = vector.broadcast %3 : vector<1x384xf32> to vector<64x384xf32>
    %5 = arith.addf %2, %4 : vector<64x384xf32>
    %c0_5 = arith.constant 0 : index
    %c0_6 = arith.constant 0 : index
    %6 = vector.load %arg4[%c0_5, %c0_6] : memref<64x384xf32, #tpu.memory_space<vmem>>, vector<64x384xf32>
    tpu.vector_store %arg4[%c0_5, %c0_6], %5 {strides = array<i32>} : memref<64x384xf32, #tpu.memory_space<vmem>>, vector<64x384xf32>,
    return
  }
  func.func @transform_0(%arg0: i32) -> (i32, i32) {
    %c0_i32 = arith.constant 0 : i32
    %c0_i32_0 = arith.constant 0 : i32
    return %arg0, %c0_i32 : i32, i32
  }
  func.func @transform_1(%arg0: i32) -> (i32, i32) {
    %c0_i32 = arith.constant 0 : i32
    %c0_i32_0 = arith.constant 0 : i32
    %c0_i32_1 = arith.constant 0 : i32
    return %c0_i32, %c0_i32_0 : i32, i32
  }
  func.func @transform_2(%arg0: i32) -> (i32, i32) {
    %c0_i32 = arith.constant 0 : i32
    %c0_i32_0 = arith.constant 0 : i32
    %c0_i32_1 = arith.constant 0 : i32
    return %c0_i32, %c0_i32_0 : i32, i32
  }
  func.func @transform_3(%arg0: i32) -> (i32, i32) {
    %c0_i32 = arith.constant 0 : i32
    %c0_i32_0 = arith.constant 0 : i32
    return %arg0, %c0_i32 : i32, i32
  }
}

module attributes {stable_mosaic.version = 11 : i64} {
  func.func @_gru_recurrence_kernel(%arg0: i32, %arg1: i32, %arg2: memref<8x8x384xf32, #tpu.memory_space<vmem>>, %arg3: memref<8x1xi32, #tpu.memory_space<vmem>>, %arg4: memref<128x384xbf16, #tpu.memory_space<vmem>>, %arg5: memref<1x128xf32, #tpu.memory_space<vmem>>, %arg6: memref<8x128xf32, #tpu.memory_space<vmem>>, %arg7: memref<8x128xf32, #tpu.memory_space<vmem>>) attributes {dimension_semantics = [#tpu.dimension_semantics<parallel>, #tpu.dimension_semantics<arbitrary>], iteration_bounds = array<i64: 1, 1>, scalar_prefetch = 0 : i64, scratch_operands = 1 : i64, tpu.core_type = #tpu.core_type<tc>, window_params = [{transform_indices = @transform_0, window_bounds = array<i64: 8, 8, 384>}, {transform_indices = @transform_1, window_bounds = array<i64: 8, 1>}, {pipeline_mode = #tpu.pipeline_mode<synchronous>, transform_indices = @transform_2, window_bounds = array<i64: 128, 384>}, {pipeline_mode = #tpu.pipeline_mode<synchronous>, transform_indices = @transform_3, window_bounds = array<i64: 1, 128>}, {transform_indices = @transform_4, window_bounds = array<i64: 8, 128>}]} {
    %c0_i32 = arith.constant 0 : i32
    %0 = arith.cmpi eq, %arg1, %c0_i32 : i32
    %1 = arith.extui %0 : i1 to i32
    %c0_i32_0 = arith.constant 0 : i32
    %2 = arith.cmpi ne, %1, %c0_i32_0 : i32
    scf.if %2 {
      %cst_61 = arith.constant 0.000000e+00 : f32
      %324 = vector.broadcast %cst_61 : f32 to vector<8x128xf32>
      %c0_62 = arith.constant 0 : index
      %c0_63 = arith.constant 0 : index
      %325 = vector.load %arg7[%c0_62, %c0_63] : memref<8x128xf32, #tpu.memory_space<vmem>>, vector<8x128xf32>
      tpu.vector_store %arg7[%c0_62, %c0_63], %324 {strides = array<i32>} : memref<8x128xf32, #tpu.memory_space<vmem>>, vector<8x128xf32>,
    } else {
    }
    %c0 = arith.constant 0 : index
    %c0_1 = arith.constant 0 : index
    %3 = vector.load %arg3[%c0, %c0_1] : memref<8x1xi32, #tpu.memory_space<vmem>>, vector<8x1xi32>
    %c0_2 = arith.constant 0 : index
    %c0_3 = arith.constant 0 : index
    %4 = vector.load %arg4[%c0_2, %c0_3] : memref<128x384xbf16, #tpu.memory_space<vmem>>, vector<128x384xbf16>
    %c0_4 = arith.constant 0 : index
    %c0_5 = arith.constant 0 : index
    %5 = vector.load %arg5[%c0_4, %c0_5] : memref<1x128xf32, #tpu.memory_space<vmem>>, vector<1x128xf32>
    %c8_i32 = arith.constant 8 : i32
    %6 = arith.muli %arg1, %c8_i32 : i32
    %c0_6 = arith.constant 0 : index
    %c0_7 = arith.constant 0 : index
    %7 = vector.load %arg7[%c0_6, %c0_7] : memref<8x128xf32, #tpu.memory_space<vmem>>, vector<8x128xf32>
    %c0_i32_8 = arith.constant 0 : i32
    %8 = arith.index_cast %c0_i32_8 : i32 to index
    %c0_9 = arith.constant 0 : index
    %c0_10 = arith.constant 0 : index
    %9 = vector.load %arg2[%8, %c0_9, %c0_10] : memref<8x8x384xf32, #tpu.memory_space<vmem>>, vector<1x8x384xf32>
    %10 = vector.shape_cast %9 : vector<1x8x384xf32> to vector<8x384xf32>
    %11 = arith.truncf %7 : vector<8x128xf32> to vector<8x128xbf16>
    %cst = arith.constant dense<0.000000e+00> : vector<8x384xf32>
    %12 = tpu.matmul %11, %4, %cst {dimension_numbers = #tpu.dot_dimension_numbers<[1], [0], [0], [1], [0, 0, 1, 1], [], []>} : vector<8x128xbf16>, vector<128x384xbf16>, vector<8x384xf32> -> vector<8x384xf32>
    %13 = vector.extract_strided_slice %10 {offsets = [0, 0], sizes = [8, 128], strides = [1, 1]} : vector<8x384xf32> to vector<8x128xf32>
    %14 = vector.extract_strided_slice %12 {offsets = [0, 0], sizes = [8, 128], strides = [1, 1]} : vector<8x384xf32> to vector<8x128xf32>
    %15 = arith.addf %13, %14 : vector<8x128xf32>
    %16 = arith.negf %15 : vector<8x128xf32>
    %17 = math.exp %16 : vector<8x128xf32>
    %cst_11 = arith.constant 1.000000e+00 : f32
    %18 = vector.broadcast %cst_11 : f32 to vector<8x128xf32>
    %19 = arith.addf %18, %17 : vector<8x128xf32>
    %20 = arith.divf %18, %19 : vector<8x128xf32>
    %21 = vector.extract_strided_slice %10 {offsets = [0, 128], sizes = [8, 128], strides = [1, 1]} : vector<8x384xf32> to vector<8x128xf32>
    %22 = vector.extract_strided_slice %12 {offsets = [0, 128], sizes = [8, 128], strides = [1, 1]} : vector<8x384xf32> to vector<8x128xf32>
    %23 = arith.addf %21, %22 : vector<8x128xf32>
    %24 = arith.negf %23 : vector<8x128xf32>
    %25 = math.exp %24 : vector<8x128xf32>
    %cst_12 = arith.constant 1.000000e+00 : f32
    %26 = vector.broadcast %cst_12 : f32 to vector<8x128xf32>
    %27 = arith.addf %26, %25 : vector<8x128xf32>
    %28 = arith.divf %26, %27 : vector<8x128xf32>
    %29 = vector.extract_strided_slice %10 {offsets = [0, 256], sizes = [8, 128], strides = [1, 1]} : vector<8x384xf32> to vector<8x128xf32>
    %30 = vector.extract_strided_slice %12 {offsets = [0, 256], sizes = [8, 128], strides = [1, 1]} : vector<8x384xf32> to vector<8x128xf32>
    %31 = vector.broadcast %5 : vector<1x128xf32> to vector<8x128xf32>
    %32 = arith.addf %30, %31 : vector<8x128xf32>
    %33 = arith.mulf %20, %32 : vector<8x128xf32>
    %34 = arith.addf %29, %33 : vector<8x128xf32>
    %35 = math.tanh %34 : vector<8x128xf32>
    %cst_13 = arith.constant 1.000000e+00 : f32
    %36 = vector.broadcast %cst_13 : f32 to vector<8x128xf32>
    %37 = arith.subf %36, %28 : vector<8x128xf32>
    %38 = arith.mulf %37, %35 : vector<8x128xf32>
    %39 = arith.mulf %28, %7 : vector<8x128xf32>
    %40 = arith.addf %38, %39 : vector<8x128xf32>
    %41 = arith.addi %6, %c0_i32_8 : i32
    %42 = vector.broadcast %41 : i32 to vector<8x1xi32>
    %43 = arith.cmpi sgt, %3, %42 : vector<8x1xi32>
    %44 = vector.shape_cast %43 : vector<8x1xi1> to vector<8x1xi1>
    %45 = vector.broadcast %44 : vector<8x1xi1> to vector<8x128xi1>
    %46 = arith.select %45, %40, %7 : vector<8x128xi1>, vector<8x128xf32>
    %c1_i32 = arith.constant 1 : i32
    %47 = arith.index_cast %c1_i32 : i32 to index
    %c0_14 = arith.constant 0 : index
    %c0_15 = arith.constant 0 : index
    %48 = vector.load %arg2[%47, %c0_14, %c0_15] : memref<8x8x384xf32, #tpu.memory_space<vmem>>, vector<1x8x384xf32>
    %49 = vector.shape_cast %48 : vector<1x8x384xf32> to vector<8x384xf32>
    %50 = arith.truncf %46 : vector<8x128xf32> to vector<8x128xbf16>
    %cst_16 = arith.constant dense<0.000000e+00> : vector<8x384xf32>
    %51 = tpu.matmul %50, %4, %cst_16 {dimension_numbers = #tpu.dot_dimension_numbers<[1], [0], [0], [1], [0, 0, 1, 1], [], []>} : vector<8x128xbf16>, vector<128x384xbf16>, vector<8x384xf32> -> vector<8x384xf32>
    %52 = vector.extract_strided_slice %49 {offsets = [0, 0], sizes = [8, 128], strides = [1, 1]} : vector<8x384xf32> to vector<8x128xf32>
    %53 = vector.extract_strided_slice %51 {offsets = [0, 0], sizes = [8, 128], strides = [1, 1]} : vector<8x384xf32> to vector<8x128xf32>
    %54 = arith.addf %52, %53 : vector<8x128xf32>
    %55 = arith.negf %54 : vector<8x128xf32>
    %56 = math.exp %55 : vector<8x128xf32>
    %cst_17 = arith.constant 1.000000e+00 : f32
    %57 = vector.broadcast %cst_17 : f32 to vector<8x128xf32>
    %58 = arith.addf %57, %56 : vector<8x128xf32>
    %59 = arith.divf %57, %58 : vector<8x128xf32>
    %60 = vector.extract_strided_slice %49 {offsets = [0, 128], sizes = [8, 128], strides = [1, 1]} : vector<8x384xf32> to vector<8x128xf32>
    %61 = vector.extract_strided_slice %51 {offsets = [0, 128], sizes = [8, 128], strides = [1, 1]} : vector<8x384xf32> to vector<8x128xf32>
    %62 = arith.addf %60, %61 : vector<8x128xf32>
    %63 = arith.negf %62 : vector<8x128xf32>
    %64 = math.exp %63 : vector<8x128xf32>
    %cst_18 = arith.constant 1.000000e+00 : f32
    %65 = vector.broadcast %cst_18 : f32 to vector<8x128xf32>
    %66 = arith.addf %65, %64 : vector<8x128xf32>
    %67 = arith.divf %65, %66 : vector<8x128xf32>
    %68 = vector.extract_strided_slice %49 {offsets = [0, 256], sizes = [8, 128], strides = [1, 1]} : vector<8x384xf32> to vector<8x128xf32>
    %69 = vector.extract_strided_slice %51 {offsets = [0, 256], sizes = [8, 128], strides = [1, 1]} : vector<8x384xf32> to vector<8x128xf32>
    %70 = vector.broadcast %5 : vector<1x128xf32> to vector<8x128xf32>
    %71 = arith.addf %69, %70 : vector<8x128xf32>
    %72 = arith.mulf %59, %71 : vector<8x128xf32>
    %73 = arith.addf %68, %72 : vector<8x128xf32>
    %74 = math.tanh %73 : vector<8x128xf32>
    %cst_19 = arith.constant 1.000000e+00 : f32
    %75 = vector.broadcast %cst_19 : f32 to vector<8x128xf32>
    %76 = arith.subf %75, %67 : vector<8x128xf32>
    %77 = arith.mulf %76, %74 : vector<8x128xf32>
    %78 = arith.mulf %67, %46 : vector<8x128xf32>
    %79 = arith.addf %77, %78 : vector<8x128xf32>
    %80 = arith.addi %6, %c1_i32 : i32
    %81 = vector.broadcast %80 : i32 to vector<8x1xi32>
    %82 = arith.cmpi sgt, %3, %81 : vector<8x1xi32>
    %83 = vector.shape_cast %82 : vector<8x1xi1> to vector<8x1xi1>
    %84 = vector.broadcast %83 : vector<8x1xi1> to vector<8x128xi1>
    %85 = arith.select %84, %79, %46 : vector<8x128xi1>, vector<8x128xf32>
    %c2_i32 = arith.constant 2 : i32
    %86 = arith.index_cast %c2_i32 : i32 to index
    %c0_20 = arith.constant 0 : index
    %c0_21 = arith.constant 0 : index
    %87 = vector.load %arg2[%86, %c0_20, %c0_21] : memref<8x8x384xf32, #tpu.memory_space<vmem>>, vector<1x8x384xf32>
    %88 = vector.shape_cast %87 : vector<1x8x384xf32> to vector<8x384xf32>
    %89 = arith.truncf %85 : vector<8x128xf32> to vector<8x128xbf16>
    %cst_22 = arith.constant dense<0.000000e+00> : vector<8x384xf32>
    %90 = tpu.matmul %89, %4, %cst_22 {dimension_numbers = #tpu.dot_dimension_numbers<[1], [0], [0], [1], [0, 0, 1, 1], [], []>} : vector<8x128xbf16>, vector<128x384xbf16>, vector<8x384xf32> -> vector<8x384xf32>
    %91 = vector.extract_strided_slice %88 {offsets = [0, 0], sizes = [8, 128], strides = [1, 1]} : vector<8x384xf32> to vector<8x128xf32>
    %92 = vector.extract_strided_slice %90 {offsets = [0, 0], sizes = [8, 128], strides = [1, 1]} : vector<8x384xf32> to vector<8x128xf32>
    %93 = arith.addf %91, %92 : vector<8x128xf32>
    %94 = arith.negf %93 : vector<8x128xf32>
    %95 = math.exp %94 : vector<8x128xf32>
    %cst_23 = arith.constant 1.000000e+00 : f32
    %96 = vector.broadcast %cst_23 : f32 to vector<8x128xf32>
    %97 = arith.addf %96, %95 : vector<8x128xf32>
    %98 = arith.divf %96, %97 : vector<8x128xf32>
    %99 = vector.extract_strided_slice %88 {offsets = [0, 128], sizes = [8, 128], strides = [1, 1]} : vector<8x384xf32> to vector<8x128xf32>
    %100 = vector.extract_strided_slice %90 {offsets = [0, 128], sizes = [8, 128], strides = [1, 1]} : vector<8x384xf32> to vector<8x128xf32>
    %101 = arith.addf %99, %100 : vector<8x128xf32>
    %102 = arith.negf %101 : vector<8x128xf32>
    %103 = math.exp %102 : vector<8x128xf32>
    %cst_24 = arith.constant 1.000000e+00 : f32
    %104 = vector.broadcast %cst_24 : f32 to vector<8x128xf32>
    %105 = arith.addf %104, %103 : vector<8x128xf32>
    %106 = arith.divf %104, %105 : vector<8x128xf32>
    %107 = vector.extract_strided_slice %88 {offsets = [0, 256], sizes = [8, 128], strides = [1, 1]} : vector<8x384xf32> to vector<8x128xf32>
    %108 = vector.extract_strided_slice %90 {offsets = [0, 256], sizes = [8, 128], strides = [1, 1]} : vector<8x384xf32> to vector<8x128xf32>
    %109 = vector.broadcast %5 : vector<1x128xf32> to vector<8x128xf32>
    %110 = arith.addf %108, %109 : vector<8x128xf32>
    %111 = arith.mulf %98, %110 : vector<8x128xf32>
    %112 = arith.addf %107, %111 : vector<8x128xf32>
    %113 = math.tanh %112 : vector<8x128xf32>
    %cst_25 = arith.constant 1.000000e+00 : f32
    %114 = vector.broadcast %cst_25 : f32 to vector<8x128xf32>
    %115 = arith.subf %114, %106 : vector<8x128xf32>
    %116 = arith.mulf %115, %113 : vector<8x128xf32>
    %117 = arith.mulf %106, %85 : vector<8x128xf32>
    %118 = arith.addf %116, %117 : vector<8x128xf32>
    %119 = arith.addi %6, %c2_i32 : i32
    %120 = vector.broadcast %119 : i32 to vector<8x1xi32>
    %121 = arith.cmpi sgt, %3, %120 : vector<8x1xi32>
    %122 = vector.shape_cast %121 : vector<8x1xi1> to vector<8x1xi1>
    %123 = vector.broadcast %122 : vector<8x1xi1> to vector<8x128xi1>
    %124 = arith.select %123, %118, %85 : vector<8x128xi1>, vector<8x128xf32>
    %c3_i32 = arith.constant 3 : i32
    %125 = arith.index_cast %c3_i32 : i32 to index
    %c0_26 = arith.constant 0 : index
    %c0_27 = arith.constant 0 : index
    %126 = vector.load %arg2[%125, %c0_26, %c0_27] : memref<8x8x384xf32, #tpu.memory_space<vmem>>, vector<1x8x384xf32>
    %127 = vector.shape_cast %126 : vector<1x8x384xf32> to vector<8x384xf32>
    %128 = arith.truncf %124 : vector<8x128xf32> to vector<8x128xbf16>
    %cst_28 = arith.constant dense<0.000000e+00> : vector<8x384xf32>
    %129 = tpu.matmul %128, %4, %cst_28 {dimension_numbers = #tpu.dot_dimension_numbers<[1], [0], [0], [1], [0, 0, 1, 1], [], []>} : vector<8x128xbf16>, vector<128x384xbf16>, vector<8x384xf32> -> vector<8x384xf32>
    %130 = vector.extract_strided_slice %127 {offsets = [0, 0], sizes = [8, 128], strides = [1, 1]} : vector<8x384xf32> to vector<8x128xf32>
    %131 = vector.extract_strided_slice %129 {offsets = [0, 0], sizes = [8, 128], strides = [1, 1]} : vector<8x384xf32> to vector<8x128xf32>
    %132 = arith.addf %130, %131 : vector<8x128xf32>
    %133 = arith.negf %132 : vector<8x128xf32>
    %134 = math.exp %133 : vector<8x128xf32>
    %cst_29 = arith.constant 1.000000e+00 : f32
    %135 = vector.broadcast %cst_29 : f32 to vector<8x128xf32>
    %136 = arith.addf %135, %134 : vector<8x128xf32>
    %137 = arith.divf %135, %136 : vector<8x128xf32>
    %138 = vector.extract_strided_slice %127 {offsets = [0, 128], sizes = [8, 128], strides = [1, 1]} : vector<8x384xf32> to vector<8x128xf32>
    %139 = vector.extract_strided_slice %129 {offsets = [0, 128], sizes = [8, 128], strides = [1, 1]} : vector<8x384xf32> to vector<8x128xf32>
    %140 = arith.addf %138, %139 : vector<8x128xf32>
    %141 = arith.negf %140 : vector<8x128xf32>
    %142 = math.exp %141 : vector<8x128xf32>
    %cst_30 = arith.constant 1.000000e+00 : f32
    %143 = vector.broadcast %cst_30 : f32 to vector<8x128xf32>
    %144 = arith.addf %143, %142 : vector<8x128xf32>
    %145 = arith.divf %143, %144 : vector<8x128xf32>
    %146 = vector.extract_strided_slice %127 {offsets = [0, 256], sizes = [8, 128], strides = [1, 1]} : vector<8x384xf32> to vector<8x128xf32>
    %147 = vector.extract_strided_slice %129 {offsets = [0, 256], sizes = [8, 128], strides = [1, 1]} : vector<8x384xf32> to vector<8x128xf32>
    %148 = vector.broadcast %5 : vector<1x128xf32> to vector<8x128xf32>
    %149 = arith.addf %147, %148 : vector<8x128xf32>
    %150 = arith.mulf %137, %149 : vector<8x128xf32>
    %151 = arith.addf %146, %150 : vector<8x128xf32>
    %152 = math.tanh %151 : vector<8x128xf32>
    %cst_31 = arith.constant 1.000000e+00 : f32
    %153 = vector.broadcast %cst_31 : f32 to vector<8x128xf32>
    %154 = arith.subf %153, %145 : vector<8x128xf32>
    %155 = arith.mulf %154, %152 : vector<8x128xf32>
    %156 = arith.mulf %145, %124 : vector<8x128xf32>
    %157 = arith.addf %155, %156 : vector<8x128xf32>
    %158 = arith.addi %6, %c3_i32 : i32
    %159 = vector.broadcast %158 : i32 to vector<8x1xi32>
    %160 = arith.cmpi sgt, %3, %159 : vector<8x1xi32>
    %161 = vector.shape_cast %160 : vector<8x1xi1> to vector<8x1xi1>
    %162 = vector.broadcast %161 : vector<8x1xi1> to vector<8x128xi1>
    %163 = arith.select %162, %157, %124 : vector<8x128xi1>, vector<8x128xf32>
    %c4_i32 = arith.constant 4 : i32
    %164 = arith.index_cast %c4_i32 : i32 to index
    %c0_32 = arith.constant 0 : index
    %c0_33 = arith.constant 0 : index
    %165 = vector.load %arg2[%164, %c0_32, %c0_33] : memref<8x8x384xf32, #tpu.memory_space<vmem>>, vector<1x8x384xf32>
    %166 = vector.shape_cast %165 : vector<1x8x384xf32> to vector<8x384xf32>
    %167 = arith.truncf %163 : vector<8x128xf32> to vector<8x128xbf16>
    %cst_34 = arith.constant dense<0.000000e+00> : vector<8x384xf32>
    %168 = tpu.matmul %167, %4, %cst_34 {dimension_numbers = #tpu.dot_dimension_numbers<[1], [0], [0], [1], [0, 0, 1, 1], [], []>} : vector<8x128xbf16>, vector<128x384xbf16>, vector<8x384xf32> -> vector<8x384xf32>
    %169 = vector.extract_strided_slice %166 {offsets = [0, 0], sizes = [8, 128], strides = [1, 1]} : vector<8x384xf32> to vector<8x128xf32>
    %170 = vector.extract_strided_slice %168 {offsets = [0, 0], sizes = [8, 128], strides = [1, 1]} : vector<8x384xf32> to vector<8x128xf32>
    %171 = arith.addf %169, %170 : vector<8x128xf32>
    %172 = arith.negf %171 : vector<8x128xf32>
    %173 = math.exp %172 : vector<8x128xf32>
    %cst_35 = arith.constant 1.000000e+00 : f32
    %174 = vector.broadcast %cst_35 : f32 to vector<8x128xf32>
    %175 = arith.addf %174, %173 : vector<8x128xf32>
    %176 = arith.divf %174, %175 : vector<8x128xf32>
    %177 = vector.extract_strided_slice %166 {offsets = [0, 128], sizes = [8, 128], strides = [1, 1]} : vector<8x384xf32> to vector<8x128xf32>
    %178 = vector.extract_strided_slice %168 {offsets = [0, 128], sizes = [8, 128], strides = [1, 1]} : vector<8x384xf32> to vector<8x128xf32>
    %179 = arith.addf %177, %178 : vector<8x128xf32>
    %180 = arith.negf %179 : vector<8x128xf32>
    %181 = math.exp %180 : vector<8x128xf32>
    %cst_36 = arith.constant 1.000000e+00 : f32
    %182 = vector.broadcast %cst_36 : f32 to vector<8x128xf32>
    %183 = arith.addf %182, %181 : vector<8x128xf32>
    %184 = arith.divf %182, %183 : vector<8x128xf32>
    %185 = vector.extract_strided_slice %166 {offsets = [0, 256], sizes = [8, 128], strides = [1, 1]} : vector<8x384xf32> to vector<8x128xf32>
    %186 = vector.extract_strided_slice %168 {offsets = [0, 256], sizes = [8, 128], strides = [1, 1]} : vector<8x384xf32> to vector<8x128xf32>
    %187 = vector.broadcast %5 : vector<1x128xf32> to vector<8x128xf32>
    %188 = arith.addf %186, %187 : vector<8x128xf32>
    %189 = arith.mulf %176, %188 : vector<8x128xf32>
    %190 = arith.addf %185, %189 : vector<8x128xf32>
    %191 = math.tanh %190 : vector<8x128xf32>
    %cst_37 = arith.constant 1.000000e+00 : f32
    %192 = vector.broadcast %cst_37 : f32 to vector<8x128xf32>
    %193 = arith.subf %192, %184 : vector<8x128xf32>
    %194 = arith.mulf %193, %191 : vector<8x128xf32>
    %195 = arith.mulf %184, %163 : vector<8x128xf32>
    %196 = arith.addf %194, %195 : vector<8x128xf32>
    %197 = arith.addi %6, %c4_i32 : i32
    %198 = vector.broadcast %197 : i32 to vector<8x1xi32>
    %199 = arith.cmpi sgt, %3, %198 : vector<8x1xi32>
    %200 = vector.shape_cast %199 : vector<8x1xi1> to vector<8x1xi1>
    %201 = vector.broadcast %200 : vector<8x1xi1> to vector<8x128xi1>
    %202 = arith.select %201, %196, %163 : vector<8x128xi1>, vector<8x128xf32>
    %c5_i32 = arith.constant 5 : i32
    %203 = arith.index_cast %c5_i32 : i32 to index
    %c0_38 = arith.constant 0 : index
    %c0_39 = arith.constant 0 : index
    %204 = vector.load %arg2[%203, %c0_38, %c0_39] : memref<8x8x384xf32, #tpu.memory_space<vmem>>, vector<1x8x384xf32>
    %205 = vector.shape_cast %204 : vector<1x8x384xf32> to vector<8x384xf32>
    %206 = arith.truncf %202 : vector<8x128xf32> to vector<8x128xbf16>
    %cst_40 = arith.constant dense<0.000000e+00> : vector<8x384xf32>
    %207 = tpu.matmul %206, %4, %cst_40 {dimension_numbers = #tpu.dot_dimension_numbers<[1], [0], [0], [1], [0, 0, 1, 1], [], []>} : vector<8x128xbf16>, vector<128x384xbf16>, vector<8x384xf32> -> vector<8x384xf32>
    %208 = vector.extract_strided_slice %205 {offsets = [0, 0], sizes = [8, 128], strides = [1, 1]} : vector<8x384xf32> to vector<8x128xf32>
    %209 = vector.extract_strided_slice %207 {offsets = [0, 0], sizes = [8, 128], strides = [1, 1]} : vector<8x384xf32> to vector<8x128xf32>
    %210 = arith.addf %208, %209 : vector<8x128xf32>
    %211 = arith.negf %210 : vector<8x128xf32>
    %212 = math.exp %211 : vector<8x128xf32>
    %cst_41 = arith.constant 1.000000e+00 : f32
    %213 = vector.broadcast %cst_41 : f32 to vector<8x128xf32>
    %214 = arith.addf %213, %212 : vector<8x128xf32>
    %215 = arith.divf %213, %214 : vector<8x128xf32>
    %216 = vector.extract_strided_slice %205 {offsets = [0, 128], sizes = [8, 128], strides = [1, 1]} : vector<8x384xf32> to vector<8x128xf32>
    %217 = vector.extract_strided_slice %207 {offsets = [0, 128], sizes = [8, 128], strides = [1, 1]} : vector<8x384xf32> to vector<8x128xf32>
    %218 = arith.addf %216, %217 : vector<8x128xf32>
    %219 = arith.negf %218 : vector<8x128xf32>
    %220 = math.exp %219 : vector<8x128xf32>
    %cst_42 = arith.constant 1.000000e+00 : f32
    %221 = vector.broadcast %cst_42 : f32 to vector<8x128xf32>
    %222 = arith.addf %221, %220 : vector<8x128xf32>
    %223 = arith.divf %221, %222 : vector<8x128xf32>
    %224 = vector.extract_strided_slice %205 {offsets = [0, 256], sizes = [8, 128], strides = [1, 1]} : vector<8x384xf32> to vector<8x128xf32>
    %225 = vector.extract_strided_slice %207 {offsets = [0, 256], sizes = [8, 128], strides = [1, 1]} : vector<8x384xf32> to vector<8x128xf32>
    %226 = vector.broadcast %5 : vector<1x128xf32> to vector<8x128xf32>
    %227 = arith.addf %225, %226 : vector<8x128xf32>
    %228 = arith.mulf %215, %227 : vector<8x128xf32>
    %229 = arith.addf %224, %228 : vector<8x128xf32>
    %230 = math.tanh %229 : vector<8x128xf32>
    %cst_43 = arith.constant 1.000000e+00 : f32
    %231 = vector.broadcast %cst_43 : f32 to vector<8x128xf32>
    %232 = arith.subf %231, %223 : vector<8x128xf32>
    %233 = arith.mulf %232, %230 : vector<8x128xf32>
    %234 = arith.mulf %223, %202 : vector<8x128xf32>
    %235 = arith.addf %233, %234 : vector<8x128xf32>
    %236 = arith.addi %6, %c5_i32 : i32
    %237 = vector.broadcast %236 : i32 to vector<8x1xi32>
    %238 = arith.cmpi sgt, %3, %237 : vector<8x1xi32>
    %239 = vector.shape_cast %238 : vector<8x1xi1> to vector<8x1xi1>
    %240 = vector.broadcast %239 : vector<8x1xi1> to vector<8x128xi1>
    %241 = arith.select %240, %235, %202 : vector<8x128xi1>, vector<8x128xf32>
    %c6_i32 = arith.constant 6 : i32
    %242 = arith.index_cast %c6_i32 : i32 to index
    %c0_44 = arith.constant 0 : index
    %c0_45 = arith.constant 0 : index
    %243 = vector.load %arg2[%242, %c0_44, %c0_45] : memref<8x8x384xf32, #tpu.memory_space<vmem>>, vector<1x8x384xf32>
    %244 = vector.shape_cast %243 : vector<1x8x384xf32> to vector<8x384xf32>
    %245 = arith.truncf %241 : vector<8x128xf32> to vector<8x128xbf16>
    %cst_46 = arith.constant dense<0.000000e+00> : vector<8x384xf32>
    %246 = tpu.matmul %245, %4, %cst_46 {dimension_numbers = #tpu.dot_dimension_numbers<[1], [0], [0], [1], [0, 0, 1, 1], [], []>} : vector<8x128xbf16>, vector<128x384xbf16>, vector<8x384xf32> -> vector<8x384xf32>
    %247 = vector.extract_strided_slice %244 {offsets = [0, 0], sizes = [8, 128], strides = [1, 1]} : vector<8x384xf32> to vector<8x128xf32>
    %248 = vector.extract_strided_slice %246 {offsets = [0, 0], sizes = [8, 128], strides = [1, 1]} : vector<8x384xf32> to vector<8x128xf32>
    %249 = arith.addf %247, %248 : vector<8x128xf32>
    %250 = arith.negf %249 : vector<8x128xf32>
    %251 = math.exp %250 : vector<8x128xf32>
    %cst_47 = arith.constant 1.000000e+00 : f32
    %252 = vector.broadcast %cst_47 : f32 to vector<8x128xf32>
    %253 = arith.addf %252, %251 : vector<8x128xf32>
    %254 = arith.divf %252, %253 : vector<8x128xf32>
    %255 = vector.extract_strided_slice %244 {offsets = [0, 128], sizes = [8, 128], strides = [1, 1]} : vector<8x384xf32> to vector<8x128xf32>
    %256 = vector.extract_strided_slice %246 {offsets = [0, 128], sizes = [8, 128], strides = [1, 1]} : vector<8x384xf32> to vector<8x128xf32>
    %257 = arith.addf %255, %256 : vector<8x128xf32>
    %258 = arith.negf %257 : vector<8x128xf32>
    %259 = math.exp %258 : vector<8x128xf32>
    %cst_48 = arith.constant 1.000000e+00 : f32
    %260 = vector.broadcast %cst_48 : f32 to vector<8x128xf32>
    %261 = arith.addf %260, %259 : vector<8x128xf32>
    %262 = arith.divf %260, %261 : vector<8x128xf32>
    %263 = vector.extract_strided_slice %244 {offsets = [0, 256], sizes = [8, 128], strides = [1, 1]} : vector<8x384xf32> to vector<8x128xf32>
    %264 = vector.extract_strided_slice %246 {offsets = [0, 256], sizes = [8, 128], strides = [1, 1]} : vector<8x384xf32> to vector<8x128xf32>
    %265 = vector.broadcast %5 : vector<1x128xf32> to vector<8x128xf32>
    %266 = arith.addf %264, %265 : vector<8x128xf32>
    %267 = arith.mulf %254, %266 : vector<8x128xf32>
    %268 = arith.addf %263, %267 : vector<8x128xf32>
    %269 = math.tanh %268 : vector<8x128xf32>
    %cst_49 = arith.constant 1.000000e+00 : f32
    %270 = vector.broadcast %cst_49 : f32 to vector<8x128xf32>
    %271 = arith.subf %270, %262 : vector<8x128xf32>
    %272 = arith.mulf %271, %269 : vector<8x128xf32>
    %273 = arith.mulf %262, %241 : vector<8x128xf32>
    %274 = arith.addf %272, %273 : vector<8x128xf32>
    %275 = arith.addi %6, %c6_i32 : i32
    %276 = vector.broadcast %275 : i32 to vector<8x1xi32>
    %277 = arith.cmpi sgt, %3, %276 : vector<8x1xi32>
    %278 = vector.shape_cast %277 : vector<8x1xi1> to vector<8x1xi1>
    %279 = vector.broadcast %278 : vector<8x1xi1> to vector<8x128xi1>
    %280 = arith.select %279, %274, %241 : vector<8x128xi1>, vector<8x128xf32>
    %c7_i32 = arith.constant 7 : i32
    %281 = arith.index_cast %c7_i32 : i32 to index
    %c0_50 = arith.constant 0 : index
    %c0_51 = arith.constant 0 : index
    %282 = vector.load %arg2[%281, %c0_50, %c0_51] : memref<8x8x384xf32, #tpu.memory_space<vmem>>, vector<1x8x384xf32>
    %283 = vector.shape_cast %282 : vector<1x8x384xf32> to vector<8x384xf32>
    %284 = arith.truncf %280 : vector<8x128xf32> to vector<8x128xbf16>
    %cst_52 = arith.constant dense<0.000000e+00> : vector<8x384xf32>
    %285 = tpu.matmul %284, %4, %cst_52 {dimension_numbers = #tpu.dot_dimension_numbers<[1], [0], [0], [1], [0, 0, 1, 1], [], []>} : vector<8x128xbf16>, vector<128x384xbf16>, vector<8x384xf32> -> vector<8x384xf32>
    %286 = vector.extract_strided_slice %283 {offsets = [0, 0], sizes = [8, 128], strides = [1, 1]} : vector<8x384xf32> to vector<8x128xf32>
    %287 = vector.extract_strided_slice %285 {offsets = [0, 0], sizes = [8, 128], strides = [1, 1]} : vector<8x384xf32> to vector<8x128xf32>
    %288 = arith.addf %286, %287 : vector<8x128xf32>
    %289 = arith.negf %288 : vector<8x128xf32>
    %290 = math.exp %289 : vector<8x128xf32>
    %cst_53 = arith.constant 1.000000e+00 : f32
    %291 = vector.broadcast %cst_53 : f32 to vector<8x128xf32>
    %292 = arith.addf %291, %290 : vector<8x128xf32>
    %293 = arith.divf %291, %292 : vector<8x128xf32>
    %294 = vector.extract_strided_slice %283 {offsets = [0, 128], sizes = [8, 128], strides = [1, 1]} : vector<8x384xf32> to vector<8x128xf32>
    %295 = vector.extract_strided_slice %285 {offsets = [0, 128], sizes = [8, 128], strides = [1, 1]} : vector<8x384xf32> to vector<8x128xf32>
    %296 = arith.addf %294, %295 : vector<8x128xf32>
    %297 = arith.negf %296 : vector<8x128xf32>
    %298 = math.exp %297 : vector<8x128xf32>
    %cst_54 = arith.constant 1.000000e+00 : f32
    %299 = vector.broadcast %cst_54 : f32 to vector<8x128xf32>
    %300 = arith.addf %299, %298 : vector<8x128xf32>
    %301 = arith.divf %299, %300 : vector<8x128xf32>
    %302 = vector.extract_strided_slice %283 {offsets = [0, 256], sizes = [8, 128], strides = [1, 1]} : vector<8x384xf32> to vector<8x128xf32>
    %303 = vector.extract_strided_slice %285 {offsets = [0, 256], sizes = [8, 128], strides = [1, 1]} : vector<8x384xf32> to vector<8x128xf32>
    %304 = vector.broadcast %5 : vector<1x128xf32> to vector<8x128xf32>
    %305 = arith.addf %303, %304 : vector<8x128xf32>
    %306 = arith.mulf %293, %305 : vector<8x128xf32>
    %307 = arith.addf %302, %306 : vector<8x128xf32>
    %308 = math.tanh %307 : vector<8x128xf32>
    %cst_55 = arith.constant 1.000000e+00 : f32
    %309 = vector.broadcast %cst_55 : f32 to vector<8x128xf32>
    %310 = arith.subf %309, %301 : vector<8x128xf32>
    %311 = arith.mulf %310, %308 : vector<8x128xf32>
    %312 = arith.mulf %301, %280 : vector<8x128xf32>
    %313 = arith.addf %311, %312 : vector<8x128xf32>
    %314 = arith.addi %6, %c7_i32 : i32
    %315 = vector.broadcast %314 : i32 to vector<8x1xi32>
    %316 = arith.cmpi sgt, %3, %315 : vector<8x1xi32>
    %317 = vector.shape_cast %316 : vector<8x1xi1> to vector<8x1xi1>
    %318 = vector.broadcast %317 : vector<8x1xi1> to vector<8x128xi1>
    %319 = arith.select %318, %313, %280 : vector<8x128xi1>, vector<8x128xf32>
    %c8_i32_56 = arith.constant 8 : i32
    %c0_57 = arith.constant 0 : index
    %c0_58 = arith.constant 0 : index
    %320 = vector.load %arg7[%c0_57, %c0_58] : memref<8x128xf32, #tpu.memory_space<vmem>>, vector<8x128xf32>
    tpu.vector_store %arg7[%c0_57, %c0_58], %319 {strides = array<i32>} : memref<8x128xf32, #tpu.memory_space<vmem>>, vector<8x128xf32>,
    %c0_i32_59 = arith.constant 0 : i32
    %321 = arith.cmpi eq, %arg1, %c0_i32_59 : i32
    %322 = arith.extui %321 : i1 to i32
    %c0_i32_60 = arith.constant 0 : i32
    %323 = arith.cmpi ne, %322, %c0_i32_60 : i32
    scf.if %323 {
      %c0_61 = arith.constant 0 : index
      %c0_62 = arith.constant 0 : index
      %324 = vector.load %arg7[%c0_61, %c0_62] : memref<8x128xf32, #tpu.memory_space<vmem>>, vector<8x128xf32>
      %c0_63 = arith.constant 0 : index
      %c0_64 = arith.constant 0 : index
      %325 = vector.load %arg6[%c0_63, %c0_64] : memref<8x128xf32, #tpu.memory_space<vmem>>, vector<8x128xf32>
      tpu.vector_store %arg6[%c0_63, %c0_64], %324 {strides = array<i32>} : memref<8x128xf32, #tpu.memory_space<vmem>>, vector<8x128xf32>,
    } else {
    }
    return
  }
  func.func @transform_0(%arg0: i32, %arg1: i32) -> (i32, i32, i32) {
    %c0_i32 = arith.constant 0 : i32
    %c0_i32_0 = arith.constant 0 : i32
    return %arg1, %arg0, %c0_i32 : i32, i32, i32
  }
  func.func @transform_1(%arg0: i32, %arg1: i32) -> (i32, i32) {
    %c0_i32 = arith.constant 0 : i32
    %c0_i32_0 = arith.constant 0 : i32
    return %arg0, %c0_i32 : i32, i32
  }
  func.func @transform_2(%arg0: i32, %arg1: i32) -> (i32, i32) {
    %c0_i32 = arith.constant 0 : i32
    %c0_i32_0 = arith.constant 0 : i32
    %c0_i32_1 = arith.constant 0 : i32
    return %c0_i32, %c0_i32_0 : i32, i32
  }
  func.func @transform_3(%arg0: i32, %arg1: i32) -> (i32, i32) {
    %c0_i32 = arith.constant 0 : i32
    %c0_i32_0 = arith.constant 0 : i32
    %c0_i32_1 = arith.constant 0 : i32
    return %c0_i32, %c0_i32_0 : i32, i32
  }
  func.func @transform_4(%arg0: i32, %arg1: i32) -> (i32, i32) {
    %c0_i32 = arith.constant 0 : i32
    %c0_i32_0 = arith.constant 0 : i32
    return %arg0, %c0_i32 : i32, i32
  }
}

module attributes {stable_mosaic.version = 11 : i64} {
  func.func @_classifier_loss_kernel(%arg0: i32, %arg1: memref<8x128xf32, #tpu.memory_space<vmem>>, %arg2: memref<128x128xbf16, #tpu.memory_space<vmem>>, %arg3: memref<1x128xf32, #tpu.memory_space<vmem>>, %arg4: memref<8x1xi32, #tpu.memory_space<vmem>>, %arg5: memref<8x128xf32, #tpu.memory_space<vmem>>, %arg6: memref<1x1xf32, #tpu.memory_space<smem>>) attributes {dimension_semantics = [#tpu.dimension_semantics<arbitrary>], iteration_bounds = array<i64: 1>, scalar_prefetch = 0 : i64, scratch_operands = 0 : i64, tpu.core_type = #tpu.core_type<tc>, window_params = [{pipeline_mode = #tpu.pipeline_mode<synchronous>, transform_indices = @transform_0, window_bounds = array<i64: 8, 128>}, {pipeline_mode = #tpu.pipeline_mode<synchronous>, transform_indices = @transform_1, window_bounds = array<i64: 128, 128>}, {pipeline_mode = #tpu.pipeline_mode<synchronous>, transform_indices = @transform_2, window_bounds = array<i64: 1, 128>}, {pipeline_mode = #tpu.pipeline_mode<synchronous>, transform_indices = @transform_3, window_bounds = array<i64: 8, 1>}, {pipeline_mode = #tpu.pipeline_mode<synchronous>, transform_indices = @transform_4, window_bounds = array<i64: 8, 128>}, {transform_indices = @transform_5, window_bounds = array<i64: 1, 1>}]} {
    %c0 = arith.constant 0 : index
    %c0_0 = arith.constant 0 : index
    %0 = vector.load %arg1[%c0, %c0_0] : memref<8x128xf32, #tpu.memory_space<vmem>>, vector<8x128xf32>
    %1 = arith.truncf %0 : vector<8x128xf32> to vector<8x128xbf16>
    %c0_1 = arith.constant 0 : index
    %c0_2 = arith.constant 0 : index
    %2 = vector.load %arg2[%c0_1, %c0_2] : memref<128x128xbf16, #tpu.memory_space<vmem>>, vector<128x128xbf16>
    %cst = arith.constant dense<0.000000e+00> : vector<8x128xf32>
    %3 = tpu.matmul %1, %2, %cst {dimension_numbers = #tpu.dot_dimension_numbers<[1], [0], [0], [1], [0, 0, 1, 1], [], []>} : vector<8x128xbf16>, vector<128x128xbf16>, vector<8x128xf32> -> vector<8x128xf32>
    %c0_3 = arith.constant 0 : index
    %c0_4 = arith.constant 0 : index
    %4 = vector.load %arg3[%c0_3, %c0_4] : memref<1x128xf32, #tpu.memory_space<vmem>>, vector<1x128xf32>
    %5 = vector.broadcast %4 : vector<1x128xf32> to vector<8x128xf32>
    %6 = arith.addf %3, %5 : vector<8x128xf32>
    %c0_5 = arith.constant 0 : index
    %c0_6 = arith.constant 0 : index
    %7 = vector.load %arg5[%c0_5, %c0_6] : memref<8x128xf32, #tpu.memory_space<vmem>>, vector<8x128xf32>
    tpu.vector_store %arg5[%c0_5, %c0_6], %6 {strides = array<i32>} : memref<8x128xf32, #tpu.memory_space<vmem>>, vector<8x128xf32>,
    %8 = tpu.iota {dimensions = array<i32: 1>} : vector<8x128xi32>
    %c3_i32 = arith.constant 3 : i32
    %9 = vector.broadcast %c3_i32 : i32 to vector<8x128xi32>
    %10 = arith.cmpi slt, %8, %9 : vector<8x128xi32>
    %cst_7 = arith.constant -1.000000e+30 : f32
    %11 = vector.broadcast %cst_7 : f32 to vector<8x128xf32>
    %12 = arith.select %10, %6, %11 : vector<8x128xi1>, vector<8x128xf32>
    %cst_8 = arith.constant dense<0xFF800000> : vector<8xf32>
    %13 = vector.multi_reduction <maximumf>, %12, %cst_8 [1] : vector<8x128xf32> to vector<8xf32>
    %14 = vector.shape_cast %13 : vector<8xf32> to vector<8x1xf32>
    %15 = vector.broadcast %14 : vector<8x1xf32> to vector<8x128xf32>
    %16 = arith.subf %12, %15 : vector<8x128xf32>
    %17 = math.exp %16 : vector<8x128xf32>
    %cst_9 = arith.constant 0.000000e+00 : f32
    %18 = vector.broadcast %cst_9 : f32 to vector<8x128xf32>
    %19 = arith.select %10, %17, %18 : vector<8x128xi1>, vector<8x128xf32>
    %cst_10 = arith.constant dense<0.000000e+00> : vector<8xf32>
    %20 = vector.multi_reduction <add>, %19, %cst_10 [1] : vector<8x128xf32> to vector<8xf32>
    %21 = vector.shape_cast %20 : vector<8xf32> to vector<8x1xf32>
    %22 = math.log %21 : vector<8x1xf32>
    %23 = arith.addf %14, %22 : vector<8x1xf32>
    %c0_11 = arith.constant 0 : index
    %c0_12 = arith.constant 0 : index
    %24 = vector.load %arg4[%c0_11, %c0_12] : memref<8x1xi32, #tpu.memory_space<vmem>>, vector<8x1xi32>
    %25 = vector.broadcast %24 : vector<8x1xi32> to vector<8x128xi32>
    %26 = arith.cmpi eq, %8, %25 : vector<8x128xi32>
    %cst_13 = arith.constant 0.000000e+00 : f32
    %27 = vector.broadcast %cst_13 : f32 to vector<8x128xf32>
    %28 = arith.select %26, %6, %27 : vector<8x128xi1>, vector<8x128xf32>
    %cst_14 = arith.constant dense<0.000000e+00> : vector<8xf32>
    %29 = vector.multi_reduction <add>, %28, %cst_14 [1] : vector<8x128xf32> to vector<8xf32>
    %30 = vector.shape_cast %29 : vector<8xf32> to vector<8x1xf32>
    %31 = tpu.iota {dimensions = array<i32: 0>} : vector<8x1xi32>
    %c4_i32 = arith.constant 4 : i32
    %32 = vector.broadcast %c4_i32 : i32 to vector<8x1xi32>
    %33 = arith.cmpi slt, %31, %32 : vector<8x1xi32>
    %34 = arith.subf %23, %30 : vector<8x1xf32>
    %cst_15 = arith.constant 0.000000e+00 : f32
    %35 = vector.broadcast %cst_15 : f32 to vector<8x1xf32>
    %36 = arith.select %33, %34, %35 : vector<8x1xi1>, vector<8x1xf32>
    %37 = vector.shape_cast %36 : vector<8x1xf32> to vector<1x8x1xf32>
    %cst_16 = arith.constant dense<0.000000e+00> : vector<1xf32>
    %38 = vector.multi_reduction <add>, %37, %cst_16 [1, 2] : vector<1x8x1xf32> to vector<1xf32>
    %39 = vector.shape_cast %38 : vector<1xf32> to vector<1x1x1xf32>
    %40 = vector.extract %39[0, 0, 0] : f32 from vector<1x1x1xf32>
    %cst_17 = arith.constant 4.000000e+00 : f32
    %41 = arith.divf %40, %cst_17 : f32
    %c0_18 = arith.constant 0 : index
    %c0_19 = arith.constant 0 : index
    %42 = memref.load %arg6[%c0_18, %c0_19] : memref<1x1xf32, #tpu.memory_space<smem>>
    memref.store %41, %arg6[%c0_18, %c0_19] : memref<1x1xf32, #tpu.memory_space<smem>>
    return
  }
  func.func @transform_0(%arg0: i32) -> (i32, i32) {
    %c0_i32 = arith.constant 0 : i32
    %c0_i32_0 = arith.constant 0 : i32
    %c0_i32_1 = arith.constant 0 : i32
    return %c0_i32, %c0_i32_0 : i32, i32
  }
  func.func @transform_1(%arg0: i32) -> (i32, i32) {
    %c0_i32 = arith.constant 0 : i32
    %c0_i32_0 = arith.constant 0 : i32
    %c0_i32_1 = arith.constant 0 : i32
    return %c0_i32, %c0_i32_0 : i32, i32
  }
  func.func @transform_2(%arg0: i32) -> (i32, i32) {
    %c0_i32 = arith.constant 0 : i32
    %c0_i32_0 = arith.constant 0 : i32
    %c0_i32_1 = arith.constant 0 : i32
    return %c0_i32, %c0_i32_0 : i32, i32
  }
  func.func @transform_3(%arg0: i32) -> (i32, i32) {
    %c0_i32 = arith.constant 0 : i32
    %c0_i32_0 = arith.constant 0 : i32
    %c0_i32_1 = arith.constant 0 : i32
    return %c0_i32, %c0_i32_0 : i32, i32
  }
  func.func @transform_4(%arg0: i32) -> (i32, i32) {
    %c0_i32 = arith.constant 0 : i32
    %c0_i32_0 = arith.constant 0 : i32
    %c0_i32_1 = arith.constant 0 : i32
    return %c0_i32, %c0_i32_0 : i32, i32
  }
  func.func @transform_5(%arg0: i32) -> (i32, i32) {
    %c0_i32 = arith.constant 0 : i32
    %c0_i32_0 = arith.constant 0 : i32
    %c0_i32_1 = arith.constant 0 : i32
    return %c0_i32, %c0_i32_0 : i32, i32
  }
}

</mosaic_0001>

<llo_original>
// kernel: multitask_classification_forward.3
$region0: #{multitask_classification_forward.3}
  #allocation0 [shape = 'u32[]', space=smem, size = 0x4, offset = 0x4, fixed_abs, tag = 'smem constant byte address 0x4 - core index']
  #allocation1 [shape = 'u32[144,128]{1,0:T(1,128)}', space=vmem, size = 0x12000, scoped, tag = 'internal scratch']
  %s0 = inlined_call_operand.vmem [shape: bf16[64,32], index: 0, kind: input, shape index: {}]
  %s1 = inlined_call_operand.vmem [shape: bf16[32,384], index: 1, kind: input, shape index: {}]
  %s2 = inlined_call_operand.vmem [shape: f32[1,384], index: 2, kind: input, shape index: {}]
  %s3 = inlined_call_operand.vmem [shape: f32[64,384], index: 3, kind: output, shape index: {}]
  %s4 = sld [smem:[#allocation0]]
  $region22: #{multitask_classification_forward.3} parent=0
    _
  %s6 = ssub.s32 1, %s4
  %s7 = scalar_select 0, %s6, %s4
  // Predicated region
  $region2: #{multitask_classification_forward.3} parent=0 // pred_check
    _
  $region3: #{multitask_classification_forward.3} parent=0 // pred_check_branch
    %9 = sbr.rel (0) target = $region5
  $region4: #{multitask_classification_forward.3} parent=0 // pred_region
    _
  $region5: #{multitask_classification_forward.3} parent=0 // pred_fallthru
    _
  // Predicated region
  $region6: #{multitask_classification_forward.3} parent=0 // pred_check
    _
  $region7: #{multitask_classification_forward.3} parent=0 // pred_check_branch
    %11 = sbr.rel (0) target = $region9
  $region8: #{multitask_classification_forward.3} parent=0 // pred_region
    _
  $region9: #{multitask_classification_forward.3} parent=0 // pred_fallthru
    _
  // Predicated region
  $region10: #{multitask_classification_forward.3} parent=0 // pred_check
    _
  $region11: #{multitask_classification_forward.3} parent=0 // pred_check_branch
    %13 = sbr.rel (0) target = $region13
  $region12: #{multitask_classification_forward.3} parent=0 // pred_region
    _
  $region13: #{multitask_classification_forward.3} parent=0 // pred_fallthru
    _
  %v15 = vld [vmem:[%s0] sm:$0xf]
  %v16 = vld [vmem:[%s0 + $0x4] sm:$0xf]
  %v17 = vld [vmem:[%s0 + $0x8] sm:$0xf]
  %v18 = vld [vmem:[%s0 + $0xc] sm:$0xf]
  %v19 = vld [vmem:[%s0 + $0x10] sm:$0xf]
  %v20 = vld [vmem:[%s0 + $0x14] sm:$0xf]
  %v21 = vld [vmem:[%s0 + $0x18] sm:$0xf]
  %v22 = vld [vmem:[%s0 + $0x1c] sm:$0xf]
  %v23 = vld [vmem:[%s1] sm:$0xff]
  %v24 = vld [vmem:[%s1 + $0x8] sm:$0xf]
  %v25 = vld [vmem:[%s1 + $0xc] sm:$0xff]
  %v26 = vld [vmem:[%s1 + $0x14] sm:$0xf]
  %v27 = vld [vmem:[%s1 + $0x18] sm:$0xff]
  %v28 = vld [vmem:[%s1 + $0x20] sm:$0xf]
  %v29 = vld [vmem:[%s1 + $0x24] sm:$0xff]
  %v30 = vld [vmem:[%s1 + $0x2c] sm:$0xf]
  %v31 = vld [vmem:[%s2] sm:$0x7]
  %v33 = vlaneseq
  %v34 = vshrl.u32 %v33, 7
  %v35 = vsub.s32 0, %v34
  %v36 = vrot.slane %v31, %v35
  %v37 = vlaneseq
  %v38 = vshrl.u32 %v37, 7
  %v39 = vsub.s32 1, %v38
  %v40 = vrot.slane %v31, %v39
  %v41 = vlaneseq
  %v42 = vshrl.u32 %v41, 7
  %v43 = vsub.s32 2, %v42
  %v44 = vrot.slane %v31, %v43
  %v56 = vunpack.c.l.b16 %v15
  %v57 = vunpack.c.l.b16 %v16
  %v58 = vunpack.c.l.b16 %v17
  %v59 = vunpack.c.l.b16 %v18
  %v60 = vunpack.c.l.b16 %v19
  %v61 = vunpack.c.l.b16 %v20
  %v62 = vunpack.c.l.b16 %v21
  %v63 = vunpack.c.l.b16 %v22
  %v64 = vpack.c.b16 %v57, %v56
  %v65 = vpack.c.b16 %v59, %v58
  %v66 = vpack.c.b16 %v61, %v60
  %v67 = vpack.c.b16 %v63, %v62
  %v76 = vunpack.c.l.b16 %v23
  %v77 = vunpack.c.h.b16 %v23
  %v78 = vunpack.c.l.b16 %v24
  %v79 = vunpack.c.l.b16 %v25
  %v80 = vunpack.c.h.b16 %v25
  %v81 = vunpack.c.l.b16 %v26
  %v82 = vunpack.c.l.b16 %v27
  %v83 = vunpack.c.h.b16 %v27
  %v84 = vunpack.c.l.b16 %v28
  %v85 = vunpack.c.l.b16 %v29
  %v86 = vunpack.c.h.b16 %v29
  %v87 = vunpack.c.l.b16 %v30
  %v88 = vpack.c.b16 %v79, %v76
  %v89 = vpack.c.b16 %v80, %v77
  %v90 = vpack.c.b16 %v81, %v78
  %v91 = vpack.c.b16 %v85, %v82
  %v92 = vpack.c.b16 %v86, %v83
  %v93 = vpack.c.b16 %v87, %v84
  %vm100 = vcmask 261120
  %v102 = vsel %vm100, %v64, 0
  %v105 = vsel %vm100, %v65, 0
  %v108 = vsel %vm100, %v66, 0
  %v111 = vsel %vm100, %v67, 0
  %113 = vmatprep.subr.bf16.mxu0 %v89
  %114 = vmatpush1.bf16.msra.mxu0 %v88
  %115 = vmatprep.subr.bf16.mxu0 %v92
  %116 = vmatpush1.bf16.msra.mxu0 %v91
  %117 = vmatprep.subr.bf16.mxu0 0
  %118 = vmatpush1.bf16.msra.mxu0 0
  %119 = vmatprep.subr.bf16.mxu0 0
  %120 = vmatpush1.bf16.msra.mxu0 0
  %121 = vmatprep.subr.bf16.mxu0 0
  %122 = vmatpush1.bf16.msra.mxu0 0
  %123 = vmatprep.subr.bf16.mxu0 0
  %124 = vmatpush1.bf16.msra.mxu0 0
  %125 = vmatprep.subr.bf16.mxu0 0
  %126 = vmatpush1.bf16.msra.mxu0 0
  %127 = vmatprep.subr.bf16.mxu0 0
  %128 = vmatpush1.bf16.msra.mxu0 0
  %129 = vmatprep.subr.bf16.mxu0 0
  %130 = vmatpush1.bf16.msra.mxu0 0
  %131 = vmatprep.subr.bf16.mxu0 0
  %132 = vmatpush1.bf16.msra.mxu0 0
  %133 = vmatprep.subr.bf16.mxu0 0
  %134 = vmatpush1.bf16.msra.mxu0 0
  %135 = vmatprep.subr.bf16.mxu0 0
  %136 = vmatpush1.bf16.msra.mxu0 0
  %137 = vmatprep.subr.bf16.mxu0 0
  %138 = vmatpush1.bf16.msra.mxu0 0
  %139 = vmatprep.subr.bf16.mxu0 0
  %140 = vmatpush1.bf16.msra.mxu0 0
  %141 = vmatprep.subr.bf16.mxu0 0
  %142 = vmatpush1.bf16.msra.mxu0 0
  %143 = vmatprep.subr.bf16.mxu0 0
  %144 = vmatpush1.bf16.msra.mxu0 0
  %145 = vmatprep.mubr.bf16.mxu0 0
  %146 = vmatmul.mubr.bf16.gmra.mrb[0].mxu0 %v102
  %v147 = vpop.f32.mrb[0].mxu0
  %v148 = vadd.f32 %v36, %v147
  %v149 = vpop.f32.mrb[0].mxu0
  %v150 = vadd.f32 %v40, %v149
  %v151 = vpop.f32.mrb[0].mxu0
  %v152 = vadd.f32 %v36, %v151
  %v153 = vpop.f32.mrb[0].mxu0
  %v154 = vadd.f32 %v40, %v153
  %155 = vmatprep.mubr.bf16.mxu0 0
  %156 = vmatmul.mubr.bf16.gmra.mrb[0].mxu0 %v105
  %v157 = vpop.f32.mrb[0].mxu0
  %v158 = vadd.f32 %v36, %v157
  %v159 = vpop.f32.mrb[0].mxu0
  %v160 = vadd.f32 %v40, %v159
  %v161 = vpop.f32.mrb[0].mxu0
  %v162 = vadd.f32 %v36, %v161
  %v163 = vpop.f32.mrb[0].mxu0
  %v164 = vadd.f32 %v40, %v163
  %165 = vmatprep.mubr.bf16.mxu0 0
  %166 = vmatmul.mubr.bf16.gmra.mrb[0].mxu0 %v108
  %v167 = vpop.f32.mrb[0].mxu0
  %v168 = vadd.f32 %v36, %v167
  %v169 = vpop.f32.mrb[0].mxu0
  %v170 = vadd.f32 %v40, %v169
  %v171 = vpop.f32.mrb[0].mxu0
  %v172 = vadd.f32 %v36, %v171
  %v173 = vpop.f32.mrb[0].mxu0
  %v174 = vadd.f32 %v40, %v173
  %175 = vmatprep.mubr.bf16.mxu0 0
  %176 = vmatmul.mubr.bf16.gmra.mrb[0].mxu0 %v111
  %v177 = vpop.f32.mrb[0].mxu0
  %v178 = vadd.f32 %v36, %v177
  %v179 = vpop.f32.mrb[0].mxu0
  %v180 = vadd.f32 %v40, %v179
  %v181 = vpop.f32.mrb[0].mxu0
  %v182 = vadd.f32 %v36, %v181
  %v183 = vpop.f32.mrb[0].mxu0
  %v184 = vadd.f32 %v40, %v183
  %185 = vdwg.mxu0
  %186 = vmatprep.subr.bf16.mxu0 0
  %187 = vmatpush1.bf16.msra.mxu0 %v90
  %188 = vmatprep.subr.bf16.mxu0 0
  %189 = vmatpush1.bf16.msra.mxu0 %v93
  %190 = vmatprep.subr.bf16.mxu0 0
  %191 = vmatpush1.bf16.msra.mxu0 0
  %192 = vmatprep.subr.bf16.mxu0 0
  %193 = vmatpush1.bf16.msra.mxu0 0
  %194 = vmatprep.subr.bf16.mxu0 0
  %195 = vmatpush1.bf16.msra.mxu0 0
  %196 = vmatprep.subr.bf16.mxu0 0
  %197 = vmatpush1.bf16.msra.mxu0 0
  %198 = vmatprep.subr.bf16.mxu0 0
  %199 = vmatpush1.bf16.msra.mxu0 0
  %200 = vmatprep.subr.bf16.mxu0 0
  %201 = vmatpush1.bf16.msra.mxu0 0
  %202 = vmatprep.subr.bf16.mxu0 0
  %203 = vmatpush1.bf16.msra.mxu0 0
  %204 = vmatprep.subr.bf16.mxu0 0
  %205 = vmatpush1.bf16.msra.mxu0 0
  %206 = vmatprep.subr.bf16.mxu0 0
  %207 = vmatpush1.bf16.msra.mxu0 0
  %208 = vmatprep.subr.bf16.mxu0 0
  %209 = vmatpush1.bf16.msra.mxu0 0
  %210 = vmatprep.subr.bf16.mxu0 0
  %211 = vmatpush1.bf16.msra.mxu0 0
  %212 = vmatprep.subr.bf16.mxu0 0
  %213 = vmatpush1.bf16.msra.mxu0 0
  %214 = vmatprep.subr.bf16.mxu0 0
  %215 = vmatpush1.bf16.msra.mxu0 0
  %216 = vmatprep.subr.bf16.mxu0 0
  %217 = vmatpush1.bf16.msra.mxu0 0
  %218 = vmatprep.mubr.bf16.mxu0 0
  %219 = vmatmul.mubr.bf16.gmra.mrb[0].mxu0 %v102
  %v220 = vpop.f32.mrb[0].mxu0
  %v221 = vadd.f32 %v44, %v220
  %v222 = vpop.f32.mrb[0].mxu0
  %v223 = vpop.f32.mrb[0].mxu0
  %v224 = vadd.f32 %v44, %v223
  %v225 = vpop.f32.mrb[0].mxu0
  %226 = vmatprep.mubr.bf16.mxu0 0
  %227 = vmatmul.mubr.bf16.gmra.mrb[0].mxu0 %v105
  %v228 = vpop.f32.mrb[0].mxu0
  %v229 = vadd.f32 %v44, %v228
  %v230 = vpop.f32.mrb[0].mxu0
  %v231 = vpop.f32.mrb[0].mxu0
  %v232 = vadd.f32 %v44, %v231
  %v233 = vpop.f32.mrb[0].mxu0
  %234 = vmatprep.mubr.bf16.mxu0 0
  %235 = vmatmul.mubr.bf16.gmra.mrb[0].mxu0 %v108
  %v236 = vpop.f32.mrb[0].mxu0
  %v237 = vadd.f32 %v44, %v236
  %v238 = vpop.f32.mrb[0].mxu0
  %v239 = vpop.f32.mrb[0].mxu0
  %v240 = vadd.f32 %v44, %v239
  %v241 = vpop.f32.mrb[0].mxu0
  %242 = vmatprep.mubr.bf16.mxu0 0
  %243 = vmatmul.mubr.bf16.gmra.mrb[0].mxu0 %v111
  %v244 = vpop.f32.mrb[0].mxu0
  %v245 = vadd.f32 %v44, %v244
  %v246 = vpop.f32.mrb[0].mxu0
  %v247 = vpop.f32.mrb[0].mxu0
  %v248 = vadd.f32 %v44, %v247
  %v249 = vpop.f32.mrb[0].mxu0
  %250 = vdwg.mxu0
  %251 = vst [vmem:[%s3] sm:$0xff] %v148
  %252 = vst [vmem:[%s3 + $0x8] sm:$0xff] %v150
  %253 = vst [vmem:[%s3 + $0x10] sm:$0xff] %v221
  %254 = vst [vmem:[%s3 + $0x18] sm:$0xff] %v152
  %255 = vst [vmem:[%s3 + $0x20] sm:$0xff] %v154
  %256 = vst [vmem:[%s3 + $0x28] sm:$0xff] %v224
  %257 = vst [vmem:[%s3 + $0x30] sm:$0xff] %v158
  %258 = vst [vmem:[%s3 + $0x38] sm:$0xff] %v160
  %259 = vst [vmem:[%s3 + $0x40] sm:$0xff] %v229
  %260 = vst [vmem:[%s3 + $0x48] sm:$0xff] %v162
  %261 = vst [vmem:[%s3 + $0x50] sm:$0xff] %v164
  %262 = vst [vmem:[%s3 + $0x58] sm:$0xff] %v232
  %263 = vst [vmem:[%s3 + $0x60] sm:$0xff] %v168
  %264 = vst [vmem:[%s3 + $0x68] sm:$0xff] %v170
  %265 = vst [vmem:[%s3 + $0x70] sm:$0xff] %v237
  %266 = vst [vmem:[%s3 + $0x78] sm:$0xff] %v172
  %267 = vst [vmem:[%s3 + $0x80] sm:$0xff] %v174
  %268 = vst [vmem:[%s3 + $0x88] sm:$0xff] %v240
  %269 = vst [vmem:[%s3 + $0x90] sm:$0xff] %v178
  %270 = vst [vmem:[%s3 + $0x98] sm:$0xff] %v180
  %271 = vst [vmem:[%s3 + $0xa0] sm:$0xff] %v245
  %272 = vst [vmem:[%s3 + $0xa8] sm:$0xff] %v182
  %273 = vst [vmem:[%s3 + $0xb0] sm:$0xff] %v184
  %274 = vst [vmem:[%s3 + $0xb8] sm:$0xff] %v248
  // Predicated region
  $region14: #{multitask_classification_forward.3} parent=0 // pred_check
    _
  $region15: #{multitask_classification_forward.3} parent=0 // pred_check_branch
    %276 = sbr.rel (0) target = $region17
  $region16: #{multitask_classification_forward.3} parent=0 // pred_region
    _
  $region17: #{multitask_classification_forward.3} parent=0 // pred_fallthru
    _
  // Predicated region
  $region18: #{multitask_classification_forward.3} parent=0 // pred_check
    _
  $region19: #{multitask_classification_forward.3} parent=0 // pred_check_branch
    %278 = sbr.rel (0) target = $region21
  $region20: #{multitask_classification_forward.3} parent=0 // pred_region
    _
  $region21: #{multitask_classification_forward.3} parent=0 // pred_fallthru
    _

// kernel: multitask_classification_forward.5
$region0: #{multitask_classification_forward.5}
  #allocation0 [shape = 'u32[]', space=smem, size = 0x4, offset = 0x4, fixed_abs, tag = 'smem constant byte address 0x4 - core index']
  #allocation1 [shape = 'u32[144,128]{1,0:T(1,128)}', space=vmem, size = 0x12000, scoped, tag = 'internal scratch']
  %s0 = inlined_call_operand.vmem [shape: f32[8,128], index: 0, kind: input, shape index: {}]
  %s1 = inlined_call_operand.vmem [shape: bf16[128,128], index: 1, kind: input, shape index: {}]
  %s2 = inlined_call_operand.vmem [shape: f32[1,128], index: 2, kind: input, shape index: {}]
  %s3 = inlined_call_operand.vmem [shape: s32[8,1], index: 3, kind: input, shape index: {}]
  %s4 = inlined_call_operand.vmem [shape: f32[8,128], index: 4, kind: output, shape index: {0}]
  %s5 = inlined_call_operand.hbm [shape: f32[1,1], index: 5, kind: output, shape index: {1}]
  %6 = xla_tuple %s4, %s5
  %s7 = sld [smem:[#allocation0]]
  $region34: #{multitask_classification_forward.5} parent=0
    _
  %s9 = ssub.s32 1, %s7
  %s10 = scalar_select 0, %s9, %s7
  $region1: #{multitask_classification_forward.5} parent=0
    #allocation2 [shape = 'u8[512]{0}', space=smem, size = 0x200, scoped, tag = 'output window, operand 1, single buffered']
    #allocation3 [shape = 's32[1]{0}', space=sflag, size = 0x4, scoped, tag = 'scoped memory for multitask_classification_forward.5']
    %11 = vsyncpa [#allocation3], 0
    // Predicated region
    $region2: #{multitask_classification_forward.5} parent=1 // pred_check
      _
    $region3: #{multitask_classification_forward.5} parent=1 // pred_check_branch
      %13 = sbr.rel (0) target = $region5
    $region4: #{multitask_classification_forward.5} parent=1 // pred_region
      _
    $region5: #{multitask_classification_forward.5} parent=1 // pred_fallthru
      _
    // Predicated region
    $region6: #{multitask_classification_forward.5} parent=1 // pred_check
      _
    $region7: #{multitask_classification_forward.5} parent=1 // pred_check_branch
      %15 = sbr.rel (0) target = $region9
    $region8: #{multitask_classification_forward.5} parent=1 // pred_region
      _
    $region9: #{multitask_classification_forward.5} parent=1 // pred_fallthru
      _
    // Predicated region
    $region10: #{multitask_classification_forward.5} parent=1 // pred_check
      _
    $region11: #{multitask_classification_forward.5} parent=1 // pred_check_branch
      %17 = sbr.rel (0) target = $region13
    $region12: #{multitask_classification_forward.5} parent=1 // pred_region
      _
    $region13: #{multitask_classification_forward.5} parent=1 // pred_fallthru
      _
    // Predicated region
    $region14: #{multitask_classification_forward.5} parent=1 // pred_check
      _
    $region15: #{multitask_classification_forward.5} parent=1 // pred_check_branch
      %19 = sbr.rel (0) target = $region17
    $region16: #{multitask_classification_forward.5} parent=1 // pred_region
      _
    $region17: #{multitask_classification_forward.5} parent=1 // pred_fallthru
      _
    %v21 = vld [vmem:[%s0] sm:$0xff]
    %v22 = vpack.c.bf16 %v21, %v21
    %v23 = vld [vmem:[%s1] sm:$0xf]
    %v24 = vld [vmem:[%s1 + $0x4] sm:$0xf]
    %v25 = vld [vmem:[%s1 + $0x8] sm:$0xf]
    %v26 = vld [vmem:[%s1 + $0xc] sm:$0xf]
    %v27 = vld [vmem:[%s1 + $0x10] sm:$0xf]
    %v28 = vld [vmem:[%s1 + $0x14] sm:$0xf]
    %v29 = vld [vmem:[%s1 + $0x18] sm:$0xf]
    %v30 = vld [vmem:[%s1 + $0x1c] sm:$0xf]
    %v31 = vld [vmem:[%s1 + $0x20] sm:$0xf]
    %v32 = vld [vmem:[%s1 + $0x24] sm:$0xf]
    %v33 = vld [vmem:[%s1 + $0x28] sm:$0xf]
    %v34 = vld [vmem:[%s1 + $0x2c] sm:$0xf]
    %v35 = vld [vmem:[%s1 + $0x30] sm:$0xf]
    %v36 = vld [vmem:[%s1 + $0x34] sm:$0xf]
    %v37 = vld [vmem:[%s1 + $0x38] sm:$0xf]
    %v38 = vld [vmem:[%s1 + $0x3c] sm:$0xf]
    %v39 = vld [vmem:[%s2] sm:$0x1]
    %v41 = vlaneseq
    %v42 = vshrl.u32 %v41, 7
    %v43 = vsub.s32 0, %v42
    %v44 = vrot.slane %v39, %v43
    %v62 = vunpack.c.l.b16 %v23
    %v63 = vunpack.c.l.b16 %v24
    %v64 = vunpack.c.l.b16 %v25
    %v65 = vunpack.c.l.b16 %v26
    %v66 = vunpack.c.l.b16 %v27
    %v67 = vunpack.c.l.b16 %v28
    %v68 = vunpack.c.l.b16 %v29
    %v69 = vunpack.c.l.b16 %v30
    %v70 = vunpack.c.l.b16 %v31
    %v71 = vunpack.c.l.b16 %v32
    %v72 = vunpack.c.l.b16 %v33
    %v73 = vunpack.c.l.b16 %v34
    %v74 = vunpack.c.l.b16 %v35
    %v75 = vunpack.c.l.b16 %v36
    %v76 = vunpack.c.l.b16 %v37
    %v77 = vunpack.c.l.b16 %v38
    %v78 = vpack.c.b16 %v63, %v62
    %v79 = vpack.c.b16 %v65, %v64
    %v80 = vpack.c.b16 %v67, %v66
    %v81 = vpack.c.b16 %v69, %v68
    %v82 = vpack.c.b16 %v71, %v70
    %v83 = vpack.c.b16 %v73, %v72
    %v84 = vpack.c.b16 %v75, %v74
    %v85 = vpack.c.b16 %v77, %v76
    %94 = vmatprep.subr.bf16.mxu0 0
    %95 = vmatpush1.bf16.msra.mxu0 %v78
    %96 = vmatprep.subr.bf16.mxu0 0
    %97 = vmatpush1.bf16.msra.mxu0 %v79
    %98 = vmatprep.subr.bf16.mxu0 0
    %99 = vmatpush1.bf16.msra.mxu0 %v80
    %100 = vmatprep.subr.bf16.mxu0 0
    %101 = vmatpush1.bf16.msra.mxu0 %v81
    %102 = vmatprep.subr.bf16.mxu0 0
    %103 = vmatpush1.bf16.msra.mxu0 %v82
    %104 = vmatprep.subr.bf16.mxu0 0
    %105 = vmatpush1.bf16.msra.mxu0 %v83
    %106 = vmatprep.subr.bf16.mxu0 0
    %107 = vmatpush1.bf16.msra.mxu0 %v84
    %108 = vmatprep.subr.bf16.mxu0 0
    %109 = vmatpush1.bf16.msra.mxu0 %v85
    %110 = vmatprep.subr.bf16.mxu0 0
    %111 = vmatpush1.bf16.msra.mxu0 0
    %112 = vmatprep.subr.bf16.mxu0 0
    %113 = vmatpush1.bf16.msra.mxu0 0
    %114 = vmatprep.subr.bf16.mxu0 0
    %115 = vmatpush1.bf16.msra.mxu0 0
    %116 = vmatprep.subr.bf16.mxu0 0
    %117 = vmatpush1.bf16.msra.mxu0 0
    %118 = vmatprep.subr.bf16.mxu0 0
    %119 = vmatpush1.bf16.msra.mxu0 0
    %120 = vmatprep.subr.bf16.mxu0 0
    %121 = vmatpush1.bf16.msra.mxu0 0
    %122 = vmatprep.subr.bf16.mxu0 0
    %123 = vmatpush1.bf16.msra.mxu0 0
    %124 = vmatprep.subr.bf16.mxu0 0
    %125 = vmatpush1.bf16.msra.mxu0 0
    %126 = vmatprep.mubr.bf16.mxu0 0
    %127 = vmatmul.mubr.bf16.gmra.mrb[0].mxu0 %v22
    %v128 = vpop.f32.mrb[0].mxu0
    %v129 = vadd.f32 %v44, %v128
    %v130 = vpop.f32.mrb[0].mxu0
    %v131 = vpop.f32.mrb[0].mxu0
    %v132 = vpop.f32.mrb[0].mxu0
    %133 = vdwg.mxu0
    %134 = vst [vmem:[%s4] sm:$0xff] %v129
    %v135 = vlaneseq
    %v136 = vand.u32 %v135, 127
    %vm137 = vcmp.lt.s32.totalorder %v136, 3
    %v138 = vsel %vm137, %v129, -1e+30
    %139 = vmax.xlane.f32.xlu0 %v138
    %v140 = vpop.xlane.xlu0 %139
    %v141 = vsub.f32 %v138, %v140
    %v142 = vmul.f32 %v141, 1.442695
    %v143 = vpow.pop %v142
    %v144 = vsel %vm137, %v143, 0.0
    %145 = vadd.xlane.f32.xlu0 %v144
    %v146 = vpop.xlane.xlu0 %145
    %v147 = vlog2.pop %v146
    %v148 = vmul.f32 %v147, 0.6931472
    %v149 = vadd.f32 %v140, %v148
    %v150 = vld [vmem:[%s3] sm:$0xff]
    %151 = vset.pattern.permute.xlu0 0
    %152 = vperm.xlu0 %151, %v150
    %v153 = vpop.permute.xlu0 %152
    %vm154 = vcmp.eq.s32.totalorder %v136, %v153
    %v155 = vsel %vm154, %v129, 0.0
    %156 = vadd.xlane.f32.xlu0 %v155
    %v157 = vpop.xlane.xlu0 %156
    %v158 = vlaneseq
    %v159 = vshrl.u32 %v158, 7
    %vm160 = vcmp.lt.s32.totalorder %v159, 4
    %v161 = vsub.f32 %v149, %v157
    %v162 = vsel %vm160, %v161, 0.0
    %vm163 = vcmask 7168
    %v164 = vsel %vm163, %v162, 0.0
    %165 = vadd.xlane.f32.xlu0 %v164
    %v166 = vpop.xlane.xlu0 %165
    %v167 = vrot.slane %v166, 4
    %v168 = vadd.f32 %v166, %v167
    %v169 = vrot.slane %v168, 2
    %v170 = vadd.f32 %v168, %v169
    %v171 = vrot.slane %v170, 1
    %v172 = vadd.f32 %v170, %v171
    %s173 = vtos %v172
    %v174 = vrcp.pop 4.0
    %s175 = vtos %v174
    %s176 = smul.f32 %s173, %s175
    %s177 = scalar_lea.smem [#allocation2], 0
    %178 = sst [smem:[%s177]] %s176
    // Predicated region
    $region18: #{multitask_classification_forward.5} parent=1 // pred_check
      _
    $region19: #{multitask_classification_forward.5} parent=1 // pred_check_branch
      %180 = sbr.rel (0) target = $region21
    $region20: #{multitask_classification_forward.5} parent=1 // pred_region
      _
    $region21: #{multitask_classification_forward.5} parent=1 // pred_fallthru
      _
    // Predicated region
    $region22: #{multitask_classification_forward.5} parent=1 // pred_check
      _
    $region23: #{multitask_classification_forward.5} parent=1 // pred_check_branch
      %182 = sbr.rel (0) target = $region25
    $region24: #{multitask_classification_forward.5} parent=1 // pred_region
      %s184 = ssub.s32 16, 16
      %185 = vsyncadd [#allocation3], %s184
      %188 = dma.smem_to_hbm [#allocation2], 16, %s5, [#allocation3]
    $region25: #{multitask_classification_forward.5} parent=1 // pred_fallthru
      _
    // Predicated region
    $region26: #{multitask_classification_forward.5} parent=1 // pred_check
      _
    $region27: #{multitask_classification_forward.5} parent=1 // pred_check_branch
      %190 = sbr.rel (0) target = $region29
    $region28: #{multitask_classification_forward.5} parent=1 // pred_region
      _
    $region29: #{multitask_classification_forward.5} parent=1 // pred_fallthru
      _
    // Predicated region
    $region30: #{multitask_classification_forward.5} parent=1 // pred_check
      _
    $region31: #{multitask_classification_forward.5} parent=1 // pred_check_branch
      %192 = sbr.rel (0) target = $region33
    $region32: #{multitask_classification_forward.5} parent=1 // pred_region
      %193 = dma.done [#allocation3], 16
    $region33: #{multitask_classification_forward.5} parent=1 // pred_fallthru
      _
    %194 = sfence
    %195 = vsyncpa [#allocation3], 1

// kernel: multitask_classification_forward.4
$region0: #{multitask_classification_forward.4}
  #allocation0 [shape = 'u32[]', space=smem, size = 0x4, offset = 0x4, fixed_abs, tag = 'smem constant byte address 0x4 - core index']
  #allocation1 [shape = 'u32[144,128]{1,0:T(1,128)}', space=vmem, size = 0x12000, scoped, tag = 'internal scratch']
  #allocation2 [shape = 'f32[8,128]{1,0:T(8,128)}', space=vmem, size = 0x1000, scoped, tag = 'scratch operand']
  %s0 = inlined_call_operand.vmem [shape: f32[8,8,384], index: 0, kind: input, shape index: {}]
  %s1 = inlined_call_operand.vmem [shape: s32[8,1], index: 1, kind: input, shape index: {}]
  %s2 = inlined_call_operand.vmem [shape: bf16[128,384], index: 2, kind: input, shape index: {}]
  %s3 = inlined_call_operand.vmem [shape: f32[1,128], index: 3, kind: input, shape index: {}]
  %s4 = inlined_call_operand.vmem [shape: f32[8,128], index: 4, kind: output, shape index: {}]
  %s5 = sld [smem:[#allocation0]]
  $region34: #{multitask_classification_forward.4} parent=0
    _
  %s7 = ssub.s32 1, %s5
  %s8 = scalar_select 0, %s7, %s5
  // Predicated region
  $region2: #{multitask_classification_forward.4} parent=0 // pred_check
    _
  $region3: #{multitask_classification_forward.4} parent=0 // pred_check_branch
    %10 = sbr.rel (0) target = $region5
  $region4: #{multitask_classification_forward.4} parent=0 // pred_region
    _
  $region5: #{multitask_classification_forward.4} parent=0 // pred_fallthru
    _
  // Predicated region
  $region6: #{multitask_classification_forward.4} parent=0 // pred_check
    _
  $region7: #{multitask_classification_forward.4} parent=0 // pred_check_branch
    %12 = sbr.rel (0) target = $region9
  $region8: #{multitask_classification_forward.4} parent=0 // pred_region
    _
  $region9: #{multitask_classification_forward.4} parent=0 // pred_fallthru
    _
  // Predicated region
  $region10: #{multitask_classification_forward.4} parent=0 // pred_check
    _
  $region11: #{multitask_classification_forward.4} parent=0 // pred_check_branch
    %14 = sbr.rel (0) target = $region13
  $region12: #{multitask_classification_forward.4} parent=0 // pred_region
    _
  $region13: #{multitask_classification_forward.4} parent=0 // pred_fallthru
    _
  // Predicated region
  $region14: #{multitask_classification_forward.4} parent=0 // pred_check
    _
  $region15: #{multitask_classification_forward.4} parent=0 // pred_check_branch
    %16 = sbr.rel (0) target = $region17
  $region16: #{multitask_classification_forward.4} parent=0 // pred_region
    _
  $region17: #{multitask_classification_forward.4} parent=0 // pred_fallthru
    _
  %p18 = scmp.eq.s32.totalorder 0, 0
  // Predicated region
  $region18: #{multitask_classification_forward.4} parent=0 // pred_check
    %p19 = pneg %p18
  $region19: #{multitask_classification_forward.4} parent=0 // pred_check_branch
    %21 = sbr.rel (%p19) target = $region21
  $region20: #{multitask_classification_forward.4} parent=0 // pred_region
    %22 = vst [vmem:[#allocation2] sm:$0xff] 0.0
  $region21: #{multitask_classification_forward.4} parent=0 // pred_fallthru
    _
  %v23 = vld [vmem:[%s1] sm:$0xff]
  %v24 = vld [vmem:[%s2] sm:$0xff]
  %v25 = vld [vmem:[%s2 + $0x8] sm:$0xf]
  %v26 = vld [vmem:[%s2 + $0xc] sm:$0xff]
  %v27 = vld [vmem:[%s2 + $0x14] sm:$0xf]
  %v28 = vld [vmem:[%s2 + $0x18] sm:$0xff]
  %v29 = vld [vmem:[%s2 + $0x20] sm:$0xf]
  %v30 = vld [vmem:[%s2 + $0x24] sm:$0xff]
  %v31 = vld [vmem:[%s2 + $0x2c] sm:$0xf]
  %v32 = vld [vmem:[%s2 + $0x30] sm:$0xff]
  %v33 = vld [vmem:[%s2 + $0x38] sm:$0xf]
  %v34 = vld [vmem:[%s2 + $0x3c] sm:$0xff]
  %v35 = vld [vmem:[%s2 + $0x44] sm:$0xf]
  %v36 = vld [vmem:[%s2 + $0x48] sm:$0xff]
  %v37 = vld [vmem:[%s2 + $0x50] sm:$0xf]
  %v38 = vld [vmem:[%s2 + $0x54] sm:$0xff]
  %v39 = vld [vmem:[%s2 + $0x5c] sm:$0xf]
  %v40 = vld [vmem:[%s2 + $0x60] sm:$0xff]
  %v41 = vld [vmem:[%s2 + $0x68] sm:$0xf]
  %v42 = vld [vmem:[%s2 + $0x6c] sm:$0xff]
  %v43 = vld [vmem:[%s2 + $0x74] sm:$0xf]
  %v44 = vld [vmem:[%s2 + $0x78] sm:$0xff]
  %v45 = vld [vmem:[%s2 + $0x80] sm:$0xf]
  %v46 = vld [vmem:[%s2 + $0x84] sm:$0xff]
  %v47 = vld [vmem:[%s2 + $0x8c] sm:$0xf]
  %v48 = vld [vmem:[%s2 + $0x90] sm:$0xff]
  %v49 = vld [vmem:[%s2 + $0x98] sm:$0xf]
  %v50 = vld [vmem:[%s2 + $0x9c] sm:$0xff]
  %v51 = vld [vmem:[%s2 + $0xa4] sm:$0xf]
  %v52 = vld [vmem:[%s2 + $0xa8] sm:$0xff]
  %v53 = vld [vmem:[%s2 + $0xb0] sm:$0xf]
  %v54 = vld [vmem:[%s2 + $0xb4] sm:$0xff]
  %v55 = vld [vmem:[%s2 + $0xbc] sm:$0xf]
  %v56 = vld [vmem:[%s3] sm:$0x1]
  %s57 = smul.u32 0, 8
  %v58 = vld [vmem:[#allocation2] sm:$0xff]
  %v59 = vld [vmem:[%s0] sm:$0xff]
  %v60 = vld [vmem:[%s0 + $0x8] sm:$0xff]
  %v61 = vld [vmem:[%s0 + $0x10] sm:$0xff]
  %v62 = vpack.c.bf16 %v58, %v58
  %v95 = vunpack.c.l.b16 %v24
  %v96 = vunpack.c.h.b16 %v24
  %v97 = vunpack.c.l.b16 %v25
  %v98 = vunpack.c.l.b16 %v26
  %v99 = vunpack.c.h.b16 %v26
  %v100 = vunpack.c.l.b16 %v27
  %v101 = vunpack.c.l.b16 %v28
  %v102 = vunpack.c.h.b16 %v28
  %v103 = vunpack.c.l.b16 %v29
  %v104 = vunpack.c.l.b16 %v30
  %v105 = vunpack.c.h.b16 %v30
  %v106 = vunpack.c.l.b16 %v31
  %v107 = vunpack.c.l.b16 %v32
  %v108 = vunpack.c.h.b16 %v32
  %v109 = vunpack.c.l.b16 %v33
  %v110 = vunpack.c.l.b16 %v34
  %v111 = vunpack.c.h.b16 %v34
  %v112 = vunpack.c.l.b16 %v35
  %v113 = vunpack.c.l.b16 %v36
  %v114 = vunpack.c.h.b16 %v36
  %v115 = vunpack.c.l.b16 %v37
  %v116 = vunpack.c.l.b16 %v38
  %v117 = vunpack.c.h.b16 %v38
  %v118 = vunpack.c.l.b16 %v39
  %v119 = vunpack.c.l.b16 %v40
  %v120 = vunpack.c.h.b16 %v40
  %v121 = vunpack.c.l.b16 %v41
  %v122 = vunpack.c.l.b16 %v42
  %v123 = vunpack.c.h.b16 %v42
  %v124 = vunpack.c.l.b16 %v43
  %v125 = vunpack.c.l.b16 %v44
  %v126 = vunpack.c.h.b16 %v44
  %v127 = vunpack.c.l.b16 %v45
  %v128 = vunpack.c.l.b16 %v46
  %v129 = vunpack.c.h.b16 %v46
  %v130 = vunpack.c.l.b16 %v47
  %v131 = vunpack.c.l.b16 %v48
  %v132 = vunpack.c.h.b16 %v48
  %v133 = vunpack.c.l.b16 %v49
  %v134 = vunpack.c.l.b16 %v50
  %v135 = vunpack.c.h.b16 %v50
  %v136 = vunpack.c.l.b16 %v51
  %v137 = vunpack.c.l.b16 %v52
  %v138 = vunpack.c.h.b16 %v52
  %v139 = vunpack.c.l.b16 %v53
  %v140 = vunpack.c.l.b16 %v54
  %v141 = vunpack.c.h.b16 %v54
  %v142 = vunpack.c.l.b16 %v55
  %v143 = vpack.c.b16 %v98, %v95
  %v144 = vpack.c.b16 %v99, %v96
  %v145 = vpack.c.b16 %v100, %v97
  %v146 = vpack.c.b16 %v104, %v101
  %v147 = vpack.c.b16 %v105, %v102
  %v148 = vpack.c.b16 %v106, %v103
  %v149 = vpack.c.b16 %v110, %v107
  %v150 = vpack.c.b16 %v111, %v108
  %v151 = vpack.c.b16 %v112, %v109
  %v152 = vpack.c.b16 %v116, %v113
  %v153 = vpack.c.b16 %v117, %v114
  %v154 = vpack.c.b16 %v118, %v115
  %v155 = vpack.c.b16 %v122, %v119
  %v156 = vpack.c.b16 %v123, %v120
  %v157 = vpack.c.b16 %v124, %v121
  %v158 = vpack.c.b16 %v128, %v125
  %v159 = vpack.c.b16 %v129, %v126
  %v160 = vpack.c.b16 %v130, %v127
  %v161 = vpack.c.b16 %v134, %v131
  %v162 = vpack.c.b16 %v135, %v132
  %v163 = vpack.c.b16 %v136, %v133
  %v164 = vpack.c.b16 %v140, %v137
  %v165 = vpack.c.b16 %v141, %v138
  %v166 = vpack.c.b16 %v142, %v139
  %191 = vmatprep.subr.bf16.mxu0 %v144
  %192 = vmatpush1.bf16.msra.mxu0 %v143
  %193 = vmatprep.subr.bf16.mxu0 %v147
  %194 = vmatpush1.bf16.msra.mxu0 %v146
  %195 = vmatprep.subr.bf16.mxu0 %v150
  %196 = vmatpush1.bf16.msra.mxu0 %v149
  %197 = vmatprep.subr.bf16.mxu0 %v153
  %198 = vmatpush1.bf16.msra.mxu0 %v152
  %199 = vmatprep.subr.bf16.mxu0 %v156
  %200 = vmatpush1.bf16.msra.mxu0 %v155
  %201 = vmatprep.subr.bf16.mxu0 %v159
  %202 = vmatpush1.bf16.msra.mxu0 %v158
  %203 = vmatprep.subr.bf16.mxu0 %v162
  %204 = vmatpush1.bf16.msra.mxu0 %v161
  %205 = vmatprep.subr.bf16.mxu0 %v165
  %206 = vmatpush1.bf16.msra.mxu0 %v164
  %207 = vmatprep.subr.bf16.mxu0 0
  %208 = vmatpush1.bf16.msra.mxu0 0
  %209 = vmatprep.subr.bf16.mxu0 0
  %210 = vmatpush1.bf16.msra.mxu0 0
  %211 = vmatprep.subr.bf16.mxu0 0
  %212 = vmatpush1.bf16.msra.mxu0 0
  %213 = vmatprep.subr.bf16.mxu0 0
  %214 = vmatpush1.bf16.msra.mxu0 0
  %215 = vmatprep.subr.bf16.mxu0 0
  %216 = vmatpush1.bf16.msra.mxu0 0
  %217 = vmatprep.subr.bf16.mxu0 0
  %218 = vmatpush1.bf16.msra.mxu0 0
  %219 = vmatprep.subr.bf16.mxu0 0
  %220 = vmatpush1.bf16.msra.mxu0 0
  %221 = vmatprep.subr.bf16.mxu0 0
  %222 = vmatpush1.bf16.msra.mxu0 0
  %223 = vmatprep.mubr.bf16.mxu0 0
  %224 = vmatmul.mubr.bf16.gmra.mrb[0].mxu0 %v62
  %v225 = vpop.f32.mrb[0].mxu0
  %v226 = vadd.f32 0.0, %v225
  %v227 = vpop.f32.mrb[0].mxu0
  %v228 = vadd.f32 0.0, %v227
  %v229 = vpop.f32.mrb[0].mxu0
  %v230 = vpop.f32.mrb[0].mxu0
  %231 = vdwg.mxu0
  %232 = vmatprep.subr.bf16.mxu0 0
  %233 = vmatpush1.bf16.msra.mxu0 %v145
  %234 = vmatprep.subr.bf16.mxu0 0
  %235 = vmatpush1.bf16.msra.mxu0 %v148
  %236 = vmatprep.subr.bf16.mxu0 0
  %237 = vmatpush1.bf16.msra.mxu0 %v151
  %238 = vmatprep.subr.bf16.mxu0 0
  %239 = vmatpush1.bf16.msra.mxu0 %v154
  %240 = vmatprep.subr.bf16.mxu0 0
  %241 = vmatpush1.bf16.msra.mxu0 %v157
  %242 = vmatprep.subr.bf16.mxu0 0
  %243 = vmatpush1.bf16.msra.mxu0 %v160
  %244 = vmatprep.subr.bf16.mxu0 0
  %245 = vmatpush1.bf16.msra.mxu0 %v163
  %246 = vmatprep.subr.bf16.mxu0 0
  %247 = vmatpush1.bf16.msra.mxu0 %v166
  %248 = vmatprep.subr.bf16.mxu0 0
  %249 = vmatpush1.bf16.msra.mxu0 0
  %250 = vmatprep.subr.bf16.mxu0 0
  %251 = vmatpush1.bf16.msra.mxu0 0
  %252 = vmatprep.subr.bf16.mxu0 0
  %253 = vmatpush1.bf16.msra.mxu0 0
  %254 = vmatprep.subr.bf16.mxu0 0
  %255 = vmatpush1.bf16.msra.mxu0 0
  %256 = vmatprep.subr.bf16.mxu0 0
  %257 = vmatpush1.bf16.msra.mxu0 0
  %258 = vmatprep.subr.bf16.mxu0 0
  %259 = vmatpush1.bf16.msra.mxu0 0
  %260 = vmatprep.subr.bf16.mxu0 0
  %261 = vmatpush1.bf16.msra.mxu0 0
  %262 = vmatprep.subr.bf16.mxu0 0
  %263 = vmatpush1.bf16.msra.mxu0 0
  %264 = vmatprep.mubr.bf16.mxu0 0
  %265 = vmatmul.mubr.bf16.gmra.mrb[0].mxu0 %v62
  %v266 = vpop.f32.mrb[0].mxu0
  %v267 = vadd.f32 0.0, %v266
  %v268 = vpop.f32.mrb[0].mxu0
  %v269 = vpop.f32.mrb[0].mxu0
  %v270 = vpop.f32.mrb[0].mxu0
  %271 = vdwg.mxu0
  %v272 = vadd.f32 %v59, %v226
  %v273 = vxor.u32 %v272, 2147483648
  %v274 = vmul.f32 %v273, 1.442695
  %v275 = vpow.pop %v274
  %v276 = vadd.f32 %v275, 1.0
  %v277 = vrcp.pop %v276
  %v278 = vmul.f32 1.0, %v277
  %v279 = vadd.f32 %v60, %v228
  %v280 = vxor.u32 %v279, 2147483648
  %v281 = vmul.f32 %v280, 1.442695
  %v282 = vpow.pop %v281
  %v283 = vadd.f32 %v282, 1.0
  %v284 = vrcp.pop %v283
  %v285 = vmul.f32 1.0, %v284
  %v287 = vlaneseq
  %v288 = vshrl.u32 %v287, 7
  %v289 = vsub.s32 0, %v288
  %v290 = vrot.slane %v56, %v289
  %v292 = vadd.f32 %v267, %v290
  %v293 = vmul.f32 %v278, %v292
  %v294 = vadd.f32 %v61, %v293
  %v295 = vtanh.pop %v294
  %v296 = vsub.f32 1.0, %v285
  %v297 = vmul.f32 %v296, %v295
  %v298 = vmul.f32 %v285, %v58
  %v299 = vadd.f32 %v297, %v298
  %v300 = vstv %s57
  %vm301 = vcmp.gt.s32.totalorder %v23, %v300
  %v302 = vsel %vm301, 1, 0
  %303 = vset.pattern.permute.xlu0 0
  %304 = vperm.xlu0 %303, %v302
  %v305 = vpop.permute.xlu0 %304
  %vm306 = vcmp.eq.s32.totalorder %v305, 1
  %v307 = vsel %vm306, %v299, %v58
  %s308 = scalar_lea.vmem %s0, 24
  %v309 = vld [vmem:[%s308] sm:$0xff]
  %v310 = vld [vmem:[%s308 + $0x8] sm:$0xff]
  %v311 = vld [vmem:[%s308 + $0x10] sm:$0xff]
  %v312 = vpack.c.bf16 %v307, %v307
  %313 = vmatprep.subr.bf16.mxu0 %v144
  %314 = vmatpush1.bf16.msra.mxu0 %v143
  %315 = vmatprep.subr.bf16.mxu0 %v147
  %316 = vmatpush1.bf16.msra.mxu0 %v146
  %317 = vmatprep.subr.bf16.mxu0 %v150
  %318 = vmatpush1.bf16.msra.mxu0 %v149
  %319 = vmatprep.subr.bf16.mxu0 %v153
  %320 = vmatpush1.bf16.msra.mxu0 %v152
  %321 = vmatprep.subr.bf16.mxu0 %v156
  %322 = vmatpush1.bf16.msra.mxu0 %v155
  %323 = vmatprep.subr.bf16.mxu0 %v159
  %324 = vmatpush1.bf16.msra.mxu0 %v158
  %325 = vmatprep.subr.bf16.mxu0 %v162
  %326 = vmatpush1.bf16.msra.mxu0 %v161
  %327 = vmatprep.subr.bf16.mxu0 %v165
  %328 = vmatpush1.bf16.msra.mxu0 %v164
  %329 = vmatprep.subr.bf16.mxu0 0
  %330 = vmatpush1.bf16.msra.mxu0 0
  %331 = vmatprep.subr.bf16.mxu0 0
  %332 = vmatpush1.bf16.msra.mxu0 0
  %333 = vmatprep.subr.bf16.mxu0 0
  %334 = vmatpush1.bf16.msra.mxu0 0
  %335 = vmatprep.subr.bf16.mxu0 0
  %336 = vmatpush1.bf16.msra.mxu0 0
  %337 = vmatprep.subr.bf16.mxu0 0
  %338 = vmatpush1.bf16.msra.mxu0 0
  %339 = vmatprep.subr.bf16.mxu0 0
  %340 = vmatpush1.bf16.msra.mxu0 0
  %341 = vmatprep.subr.bf16.mxu0 0
  %342 = vmatpush1.bf16.msra.mxu0 0
  %343 = vmatprep.subr.bf16.mxu0 0
  %344 = vmatpush1.bf16.msra.mxu0 0
  %345 = vmatprep.mubr.bf16.mxu0 0
  %346 = vmatmul.mubr.bf16.gmra.mrb[0].mxu0 %v312
  %v347 = vpop.f32.mrb[0].mxu0
  %v348 = vadd.f32 0.0, %v347
  %v349 = vpop.f32.mrb[0].mxu0
  %v350 = vadd.f32 0.0, %v349
  %v351 = vpop.f32.mrb[0].mxu0
  %v352 = vpop.f32.mrb[0].mxu0
  %353 = vdwg.mxu0
  %354 = vmatprep.subr.bf16.mxu0 0
  %355 = vmatpush1.bf16.msra.mxu0 %v145
  %356 = vmatprep.subr.bf16.mxu0 0
  %357 = vmatpush1.bf16.msra.mxu0 %v148
  %358 = vmatprep.subr.bf16.mxu0 0
  %359 = vmatpush1.bf16.msra.mxu0 %v151
  %360 = vmatprep.subr.bf16.mxu0 0
  %361 = vmatpush1.bf16.msra.mxu0 %v154
  %362 = vmatprep.subr.bf16.mxu0 0
  %363 = vmatpush1.bf16.msra.mxu0 %v157
  %364 = vmatprep.subr.bf16.mxu0 0
  %365 = vmatpush1.bf16.msra.mxu0 %v160
  %366 = vmatprep.subr.bf16.mxu0 0
  %367 = vmatpush1.bf16.msra.mxu0 %v163
  %368 = vmatprep.subr.bf16.mxu0 0
  %369 = vmatpush1.bf16.msra.mxu0 %v166
  %370 = vmatprep.subr.bf16.mxu0 0
  %371 = vmatpush1.bf16.msra.mxu0 0
  %372 = vmatprep.subr.bf16.mxu0 0
  %373 = vmatpush1.bf16.msra.mxu0 0
  %374 = vmatprep.subr.bf16.mxu0 0
  %375 = vmatpush1.bf16.msra.mxu0 0
  %376 = vmatprep.subr.bf16.mxu0 0
  %377 = vmatpush1.bf16.msra.mxu0 0
  %378 = vmatprep.subr.bf16.mxu0 0
  %379 = vmatpush1.bf16.msra.mxu0 0
  %380 = vmatprep.subr.bf16.mxu0 0
  %381 = vmatpush1.bf16.msra.mxu0 0
  %382 = vmatprep.subr.bf16.mxu0 0
  %383 = vmatpush1.bf16.msra.mxu0 0
  %384 = vmatprep.subr.bf16.mxu0 0
  %385 = vmatpush1.bf16.msra.mxu0 0
  %386 = vmatprep.mubr.bf16.mxu0 0
  %387 = vmatmul.mubr.bf16.gmra.mrb[0].mxu0 %v312
  %v388 = vpop.f32.mrb[0].mxu0
  %v389 = vadd.f32 0.0, %v388
  %v390 = vpop.f32.mrb[0].mxu0
  %v391 = vpop.f32.mrb[0].mxu0
  %v392 = vpop.f32.mrb[0].mxu0
  %393 = vdwg.mxu0
  %v394 = vadd.f32 %v309, %v348
  %v395 = vxor.u32 %v394, 2147483648
  %v396 = vmul.f32 %v395, 1.442695
  %v397 = vpow.pop %v396
  %v398 = vadd.f32 %v397, 1.0
  %v399 = vrcp.pop %v398
  %v400 = vmul.f32 1.0, %v399
  %v401 = vadd.f32 %v310, %v350
  %v402 = vxor.u32 %v401, 2147483648
  %v403 = vmul.f32 %v402, 1.442695
  %v404 = vpow.pop %v403
  %v405 = vadd.f32 %v404, 1.0
  %v406 = vrcp.pop %v405
  %v407 = vmul.f32 1.0, %v406
  %v408 = vadd.f32 %v389, %v290
  %v409 = vmul.f32 %v400, %v408
  %v410 = vadd.f32 %v311, %v409
  %v411 = vtanh.pop %v410
  %v412 = vsub.f32 1.0, %v407
  %v413 = vmul.f32 %v412, %v411
  %v414 = vmul.f32 %v407, %v307
  %v415 = vadd.f32 %v413, %v414
  %s416 = sadd.s32 %s57, 1
  %v417 = vstv %s416
  %vm418 = vcmp.gt.s32.totalorder %v23, %v417
  %v419 = vsel %vm418, 1, 0
  %420 = vset.pattern.permute.xlu0 0
  %421 = vperm.xlu0 %420, %v419
  %v422 = vpop.permute.xlu0 %421
  %vm423 = vcmp.eq.s32.totalorder %v422, 1
  %v424 = vsel %vm423, %v415, %v307
  %s425 = scalar_lea.vmem %s0, 48
  %v426 = vld [vmem:[%s425] sm:$0xff]
  %v427 = vld [vmem:[%s425 + $0x8] sm:$0xff]
  %v428 = vld [vmem:[%s425 + $0x10] sm:$0xff]
  %v429 = vpack.c.bf16 %v424, %v424
  %430 = vmatprep.subr.bf16.mxu0 %v144
  %431 = vmatpush1.bf16.msra.mxu0 %v143
  %432 = vmatprep.subr.bf16.mxu0 %v147
  %433 = vmatpush1.bf16.msra.mxu0 %v146
  %434 = vmatprep.subr.bf16.mxu0 %v150
  %435 = vmatpush1.bf16.msra.mxu0 %v149
  %436 = vmatprep.subr.bf16.mxu0 %v153
  %437 = vmatpush1.bf16.msra.mxu0 %v152
  %438 = vmatprep.subr.bf16.mxu0 %v156
  %439 = vmatpush1.bf16.msra.mxu0 %v155
  %440 = vmatprep.subr.bf16.mxu0 %v159
  %441 = vmatpush1.bf16.msra.mxu0 %v158
  %442 = vmatprep.subr.bf16.mxu0 %v162
  %443 = vmatpush1.bf16.msra.mxu0 %v161
  %444 = vmatprep.subr.bf16.mxu0 %v165
  %445 = vmatpush1.bf16.msra.mxu0 %v164
  %446 = vmatprep.subr.bf16.mxu0 0
  %447 = vmatpush1.bf16.msra.mxu0 0
  %448 = vmatprep.subr.bf16.mxu0 0
  %449 = vmatpush1.bf16.msra.mxu0 0
  %450 = vmatprep.subr.bf16.mxu0 0
  %451 = vmatpush1.bf16.msra.mxu0 0
  %452 = vmatprep.subr.bf16.mxu0 0
  %453 = vmatpush1.bf16.msra.mxu0 0
  %454 = vmatprep.subr.bf16.mxu0 0
  %455 = vmatpush1.bf16.msra.mxu0 0
  %456 = vmatprep.subr.bf16.mxu0 0
  %457 = vmatpush1.bf16.msra.mxu0 0
  %458 = vmatprep.subr.bf16.mxu0 0
  %459 = vmatpush1.bf16.msra.mxu0 0
  %460 = vmatprep.subr.bf16.mxu0 0
  %461 = vmatpush1.bf16.msra.mxu0 0
  %462 = vmatprep.mubr.bf16.mxu0 0
  %463 = vmatmul.mubr.bf16.gmra.mrb[0].mxu0 %v429
  %v464 = vpop.f32.mrb[0].mxu0
  %v465 = vadd.f32 0.0, %v464
  %v466 = vpop.f32.mrb[0].mxu0
  %v467 = vadd.f32 0.0, %v466
  %v468 = vpop.f32.mrb[0].mxu0
  %v469 = vpop.f32.mrb[0].mxu0
  %470 = vdwg.mxu0
  %471 = vmatprep.subr.bf16.mxu0 0
  %472 = vmatpush1.bf16.msra.mxu0 %v145
  %473 = vmatprep.subr.bf16.mxu0 0
  %474 = vmatpush1.bf16.msra.mxu0 %v148
  %475 = vmatprep.subr.bf16.mxu0 0
  %476 = vmatpush1.bf16.msra.mxu0 %v151
  %477 = vmatprep.subr.bf16.mxu0 0
  %478 = vmatpush1.bf16.msra.mxu0 %v154
  %479 = vmatprep.subr.bf16.mxu0 0
  %480 = vmatpush1.bf16.msra.mxu0 %v157
  %481 = vmatprep.subr.bf16.mxu0 0
  %482 = vmatpush1.bf16.msra.mxu0 %v160
  %483 = vmatprep.subr.bf16.mxu0 0
  %484 = vmatpush1.bf16.msra.mxu0 %v163
  %485 = vmatprep.subr.bf16.mxu0 0
  %486 = vmatpush1.bf16.msra.mxu0 %v166
  %487 = vmatprep.subr.bf16.mxu0 0
  %488 = vmatpush1.bf16.msra.mxu0 0
  %489 = vmatprep.subr.bf16.mxu0 0
  %490 = vmatpush1.bf16.msra.mxu0 0
  %491 = vmatprep.subr.bf16.mxu0 0
  %492 = vmatpush1.bf16.msra.mxu0 0
  %493 = vmatprep.subr.bf16.mxu0 0
  %494 = vmatpush1.bf16.msra.mxu0 0
  %495 = vmatprep.subr.bf16.mxu0 0
  %496 = vmatpush1.bf16.msra.mxu0 0
  %497 = vmatprep.subr.bf16.mxu0 0
  %498 = vmatpush1.bf16.msra.mxu0 0
  %499 = vmatprep.subr.bf16.mxu0 0
  %500 = vmatpush1.bf16.msra.mxu0 0
  %501 = vmatprep.subr.bf16.mxu0 0
  %502 = vmatpush1.bf16.msra.mxu0 0
  %503 = vmatprep.mubr.bf16.mxu0 0
  %504 = vmatmul.mubr.bf16.gmra.mrb[0].mxu0 %v429
  %v505 = vpop.f32.mrb[0].mxu0
  %v506 = vadd.f32 0.0, %v505
  %v507 = vpop.f32.mrb[0].mxu0
  %v508 = vpop.f32.mrb[0].mxu0
  %v509 = vpop.f32.mrb[0].mxu0
  %510 = vdwg.mxu0
  %v511 = vadd.f32 %v426, %v465
  %v512 = vxor.u32 %v511, 2147483648
  %v513 = vmul.f32 %v512, 1.442695
  %v514 = vpow.pop %v513
  %v515 = vadd.f32 %v514, 1.0
  %v516 = vrcp.pop %v515
  %v517 = vmul.f32 1.0, %v516
  %v518 = vadd.f32 %v427, %v467
  %v519 = vxor.u32 %v518, 2147483648
  %v520 = vmul.f32 %v519, 1.442695
  %v521 = vpow.pop %v520
  %v522 = vadd.f32 %v521, 1.0
  %v523 = vrcp.pop %v522
  %v524 = vmul.f32 1.0, %v523
  %v525 = vadd.f32 %v506, %v290
  %v526 = vmul.f32 %v517, %v525
  %v527 = vadd.f32 %v428, %v526
  %v528 = vtanh.pop %v527
  %v529 = vsub.f32 1.0, %v524
  %v530 = vmul.f32 %v529, %v528
  %v531 = vmul.f32 %v524, %v424
  %v532 = vadd.f32 %v530, %v531
  %s533 = sadd.s32 %s57, 2
  %v534 = vstv %s533
  %vm535 = vcmp.gt.s32.totalorder %v23, %v534
  %v536 = vsel %vm535, 1, 0
  %537 = vset.pattern.permute.xlu0 0
  %538 = vperm.xlu0 %537, %v536
  %v539 = vpop.permute.xlu0 %538
  %vm540 = vcmp.eq.s32.totalorder %v539, 1
  %v541 = vsel %vm540, %v532, %v424
  %s542 = scalar_lea.vmem %s0, 72
  %v543 = vld [vmem:[%s542] sm:$0xff]
  %v544 = vld [vmem:[%s542 + $0x8] sm:$0xff]
  %v545 = vld [vmem:[%s542 + $0x10] sm:$0xff]
  %v546 = vpack.c.bf16 %v541, %v541
  %547 = vmatprep.subr.bf16.mxu0 %v144
  %548 = vmatpush1.bf16.msra.mxu0 %v143
  %549 = vmatprep.subr.bf16.mxu0 %v147
  %550 = vmatpush1.bf16.msra.mxu0 %v146
  %551 = vmatprep.subr.bf16.mxu0 %v150
  %552 = vmatpush1.bf16.msra.mxu0 %v149
  %553 = vmatprep.subr.bf16.mxu0 %v153
  %554 = vmatpush1.bf16.msra.mxu0 %v152
  %555 = vmatprep.subr.bf16.mxu0 %v156
  %556 = vmatpush1.bf16.msra.mxu0 %v155
  %557 = vmatprep.subr.bf16.mxu0 %v159
  %558 = vmatpush1.bf16.msra.mxu0 %v158
  %559 = vmatprep.subr.bf16.mxu0 %v162
  %560 = vmatpush1.bf16.msra.mxu0 %v161
  %561 = vmatprep.subr.bf16.mxu0 %v165
  %562 = vmatpush1.bf16.msra.mxu0 %v164
  %563 = vmatprep.subr.bf16.mxu0 0
  %564 = vmatpush1.bf16.msra.mxu0 0
  %565 = vmatprep.subr.bf16.mxu0 0
  %566 = vmatpush1.bf16.msra.mxu0 0
  %567 = vmatprep.subr.bf16.mxu0 0
  %568 = vmatpush1.bf16.msra.mxu0 0
  %569 = vmatprep.subr.bf16.mxu0 0
  %570 = vmatpush1.bf16.msra.mxu0 0
  %571 = vmatprep.subr.bf16.mxu0 0
  %572 = vmatpush1.bf16.msra.mxu0 0
  %573 = vmatprep.subr.bf16.mxu0 0
  %574 = vmatpush1.bf16.msra.mxu0 0
  %575 = vmatprep.subr.bf16.mxu0 0
  %576 = vmatpush1.bf16.msra.mxu0 0
  %577 = vmatprep.subr.bf16.mxu0 0
  %578 = vmatpush1.bf16.msra.mxu0 0
  %579 = vmatprep.mubr.bf16.mxu0 0
  %580 = vmatmul.mubr.bf16.gmra.mrb[0].mxu0 %v546
  %v581 = vpop.f32.mrb[0].mxu0
  %v582 = vadd.f32 0.0, %v581
  %v583 = vpop.f32.mrb[0].mxu0
  %v584 = vadd.f32 0.0, %v583
  %v585 = vpop.f32.mrb[0].mxu0
  %v586 = vpop.f32.mrb[0].mxu0
  %587 = vdwg.mxu0
  %588 = vmatprep.subr.bf16.mxu0 0
  %589 = vmatpush1.bf16.msra.mxu0 %v145
  %590 = vmatprep.subr.bf16.mxu0 0
  %591 = vmatpush1.bf16.msra.mxu0 %v148
  %592 = vmatprep.subr.bf16.mxu0 0
  %593 = vmatpush1.bf16.msra.mxu0 %v151
  %594 = vmatprep.subr.bf16.mxu0 0
  %595 = vmatpush1.bf16.msra.mxu0 %v154
  %596 = vmatprep.subr.bf16.mxu0 0
  %597 = vmatpush1.bf16.msra.mxu0 %v157
  %598 = vmatprep.subr.bf16.mxu0 0
  %599 = vmatpush1.bf16.msra.mxu0 %v160
  %600 = vmatprep.subr.bf16.mxu0 0
  %601 = vmatpush1.bf16.msra.mxu0 %v163
  %602 = vmatprep.subr.bf16.mxu0 0
  %603 = vmatpush1.bf16.msra.mxu0 %v166
  %604 = vmatprep.subr.bf16.mxu0 0
  %605 = vmatpush1.bf16.msra.mxu0 0
  %606 = vmatprep.subr.bf16.mxu0 0
  %607 = vmatpush1.bf16.msra.mxu0 0
  %608 = vmatprep.subr.bf16.mxu0 0
  %609 = vmatpush1.bf16.msra.mxu0 0
  %610 = vmatprep.subr.bf16.mxu0 0
  %611 = vmatpush1.bf16.msra.mxu0 0
  %612 = vmatprep.subr.bf16.mxu0 0
  %613 = vmatpush1.bf16.msra.mxu0 0
  %614 = vmatprep.subr.bf16.mxu0 0
  %615 = vmatpush1.bf16.msra.mxu0 0
  %616 = vmatprep.subr.bf16.mxu0 0
  %617 = vmatpush1.bf16.msra.mxu0 0
  %618 = vmatprep.subr.bf16.mxu0 0
  %619 = vmatpush1.bf16.msra.mxu0 0
  %620 = vmatprep.mubr.bf16.mxu0 0
  %621 = vmatmul.mubr.bf16.gmra.mrb[0].mxu0 %v546
  %v622 = vpop.f32.mrb[0].mxu0
  %v623 = vadd.f32 0.0, %v622
  %v624 = vpop.f32.mrb[0].mxu0
  %v625 = vpop.f32.mrb[0].mxu0
  %v626 = vpop.f32.mrb[0].mxu0
  %627 = vdwg.mxu0
  %v628 = vadd.f32 %v543, %v582
  %v629 = vxor.u32 %v628, 2147483648
  %v630 = vmul.f32 %v629, 1.442695
  %v631 = vpow.pop %v630
  %v632 = vadd.f32 %v631, 1.0
  %v633 = vrcp.pop %v632
  %v634 = vmul.f32 1.0, %v633
  %v635 = vadd.f32 %v544, %v584
  %v636 = vxor.u32 %v635, 2147483648
  %v637 = vmul.f32 %v636, 1.442695
  %v638 = vpow.pop %v637
  %v639 = vadd.f32 %v638, 1.0
  %v640 = vrcp.pop %v639
  %v641 = vmul.f32 1.0, %v640
  %v642 = vadd.f32 %v623, %v290
  %v643 = vmul.f32 %v634, %v642
  %v644 = vadd.f32 %v545, %v643
  %v645 = vtanh.pop %v644
  %v646 = vsub.f32 1.0, %v641
  %v647 = vmul.f32 %v646, %v645
  %v648 = vmul.f32 %v641, %v541
  %v649 = vadd.f32 %v647, %v648
  %s650 = sadd.s32 %s57, 3
  %v651 = vstv %s650
  %vm652 = vcmp.gt.s32.totalorder %v23, %v651
  %v653 = vsel %vm652, 1, 0
  %654 = vset.pattern.permute.xlu0 0
  %655 = vperm.xlu0 %654, %v653
  %v656 = vpop.permute.xlu0 %655
  %vm657 = vcmp.eq.s32.totalorder %v656, 1
  %v658 = vsel %vm657, %v649, %v541
  %s659 = scalar_lea.vmem %s0, 96
  %v660 = vld [vmem:[%s659] sm:$0xff]
  %v661 = vld [vmem:[%s659 + $0x8] sm:$0xff]
  %v662 = vld [vmem:[%s659 + $0x10] sm:$0xff]
  %v663 = vpack.c.bf16 %v658, %v658
  %664 = vmatprep.subr.bf16.mxu0 %v144
  %665 = vmatpush1.bf16.msra.mxu0 %v143
  %666 = vmatprep.subr.bf16.mxu0 %v147
  %667 = vmatpush1.bf16.msra.mxu0 %v146
  %668 = vmatprep.subr.bf16.mxu0 %v150
  %669 = vmatpush1.bf16.msra.mxu0 %v149
  %670 = vmatprep.subr.bf16.mxu0 %v153
  %671 = vmatpush1.bf16.msra.mxu0 %v152
  %672 = vmatprep.subr.bf16.mxu0 %v156
  %673 = vmatpush1.bf16.msra.mxu0 %v155
  %674 = vmatprep.subr.bf16.mxu0 %v159
  %675 = vmatpush1.bf16.msra.mxu0 %v158
  %676 = vmatprep.subr.bf16.mxu0 %v162
  %677 = vmatpush1.bf16.msra.mxu0 %v161
  %678 = vmatprep.subr.bf16.mxu0 %v165
  %679 = vmatpush1.bf16.msra.mxu0 %v164
  %680 = vmatprep.subr.bf16.mxu0 0
  %681 = vmatpush1.bf16.msra.mxu0 0
  %682 = vmatprep.subr.bf16.mxu0 0
  %683 = vmatpush1.bf16.msra.mxu0 0
  %684 = vmatprep.subr.bf16.mxu0 0
  %685 = vmatpush1.bf16.msra.mxu0 0
  %686 = vmatprep.subr.bf16.mxu0 0
  %687 = vmatpush1.bf16.msra.mxu0 0
  %688 = vmatprep.subr.bf16.mxu0 0
  %689 = vmatpush1.bf16.msra.mxu0 0
  %690 = vmatprep.subr.bf16.mxu0 0
  %691 = vmatpush1.bf16.msra.mxu0 0
  %692 = vmatprep.subr.bf16.mxu0 0
  %693 = vmatpush1.bf16.msra.mxu0 0
  %694 = vmatprep.subr.bf16.mxu0 0
  %695 = vmatpush1.bf16.msra.mxu0 0
  %696 = vmatprep.mubr.bf16.mxu0 0
  %697 = vmatmul.mubr.bf16.gmra.mrb[0].mxu0 %v663
  %v698 = vpop.f32.mrb[0].mxu0
  %v699 = vadd.f32 0.0, %v698
  %v700 = vpop.f32.mrb[0].mxu0
  %v701 = vadd.f32 0.0, %v700
  %v702 = vpop.f32.mrb[0].mxu0
  %v703 = vpop.f32.mrb[0].mxu0
  %704 = vdwg.mxu0
  %705 = vmatprep.subr.bf16.mxu0 0
  %706 = vmatpush1.bf16.msra.mxu0 %v145
  %707 = vmatprep.subr.bf16.mxu0 0
  %708 = vmatpush1.bf16.msra.mxu0 %v148
  %709 = vmatprep.subr.bf16.mxu0 0
  %710 = vmatpush1.bf16.msra.mxu0 %v151
  %711 = vmatprep.subr.bf16.mxu0 0
  %712 = vmatpush1.bf16.msra.mxu0 %v154
  %713 = vmatprep.subr.bf16.mxu0 0
  %714 = vmatpush1.bf16.msra.mxu0 %v157
  %715 = vmatprep.subr.bf16.mxu0 0
  %716 = vmatpush1.bf16.msra.mxu0 %v160
  %717 = vmatprep.subr.bf16.mxu0 0
  %718 = vmatpush1.bf16.msra.mxu0 %v163
  %719 = vmatprep.subr.bf16.mxu0 0
  %720 = vmatpush1.bf16.msra.mxu0 %v166
  %721 = vmatprep.subr.bf16.mxu0 0
  %722 = vmatpush1.bf16.msra.mxu0 0
  %723 = vmatprep.subr.bf16.mxu0 0
  %724 = vmatpush1.bf16.msra.mxu0 0
  %725 = vmatprep.subr.bf16.mxu0 0
  %726 = vmatpush1.bf16.msra.mxu0 0
  %727 = vmatprep.subr.bf16.mxu0 0
  %728 = vmatpush1.bf16.msra.mxu0 0
  %729 = vmatprep.subr.bf16.mxu0 0
  %730 = vmatpush1.bf16.msra.mxu0 0
  %731 = vmatprep.subr.bf16.mxu0 0
  %732 = vmatpush1.bf16.msra.mxu0 0
  %733 = vmatprep.subr.bf16.mxu0 0
  %734 = vmatpush1.bf16.msra.mxu0 0
  %735 = vmatprep.subr.bf16.mxu0 0
  %736 = vmatpush1.bf16.msra.mxu0 0
  %737 = vmatprep.mubr.bf16.mxu0 0
  %738 = vmatmul.mubr.bf16.gmra.mrb[0].mxu0 %v663
  %v739 = vpop.f32.mrb[0].mxu0
  %v740 = vadd.f32 0.0, %v739
  %v741 = vpop.f32.mrb[0].mxu0
  %v742 = vpop.f32.mrb[0].mxu0
  %v743 = vpop.f32.mrb[0].mxu0
  %744 = vdwg.mxu0
  %v745 = vadd.f32 %v660, %v699
  %v746 = vxor.u32 %v745, 2147483648
  %v747 = vmul.f32 %v746, 1.442695
  %v748 = vpow.pop %v747
  %v749 = vadd.f32 %v748, 1.0
  %v750 = vrcp.pop %v749
  %v751 = vmul.f32 1.0, %v750
  %v752 = vadd.f32 %v661, %v701
  %v753 = vxor.u32 %v752, 2147483648
  %v754 = vmul.f32 %v753, 1.442695
  %v755 = vpow.pop %v754
  %v756 = vadd.f32 %v755, 1.0
  %v757 = vrcp.pop %v756
  %v758 = vmul.f32 1.0, %v757
  %v759 = vadd.f32 %v740, %v290
  %v760 = vmul.f32 %v751, %v759
  %v761 = vadd.f32 %v662, %v760
  %v762 = vtanh.pop %v761
  %v763 = vsub.f32 1.0, %v758
  %v764 = vmul.f32 %v763, %v762
  %v765 = vmul.f32 %v758, %v658
  %v766 = vadd.f32 %v764, %v765
  %s767 = sadd.s32 %s57, 4
  %v768 = vstv %s767
  %vm769 = vcmp.gt.s32.totalorder %v23, %v768
  %v770 = vsel %vm769, 1, 0
  %771 = vset.pattern.permute.xlu0 0
  %772 = vperm.xlu0 %771, %v770
  %v773 = vpop.permute.xlu0 %772
  %vm774 = vcmp.eq.s32.totalorder %v773, 1
  %v775 = vsel %vm774, %v766, %v658
  %s776 = scalar_lea.vmem %s0, 120
  %v777 = vld [vmem:[%s776] sm:$0xff]
  %v778 = vld [vmem:[%s776 + $0x8] sm:$0xff]
  %v779 = vld [vmem:[%s776 + $0x10] sm:$0xff]
  %v780 = vpack.c.bf16 %v775, %v775
  %781 = vmatprep.subr.bf16.mxu0 %v144
  %782 = vmatpush1.bf16.msra.mxu0 %v143
  %783 = vmatprep.subr.bf16.mxu0 %v147
  %784 = vmatpush1.bf16.msra.mxu0 %v146
  %785 = vmatprep.subr.bf16.mxu0 %v150
  %786 = vmatpush1.bf16.msra.mxu0 %v149
  %787 = vmatprep.subr.bf16.mxu0 %v153
  %788 = vmatpush1.bf16.msra.mxu0 %v152
  %789 = vmatprep.subr.bf16.mxu0 %v156
  %790 = vmatpush1.bf16.msra.mxu0 %v155
  %791 = vmatprep.subr.bf16.mxu0 %v159
  %792 = vmatpush1.bf16.msra.mxu0 %v158
  %793 = vmatprep.subr.bf16.mxu0 %v162
  %794 = vmatpush1.bf16.msra.mxu0 %v161
  %795 = vmatprep.subr.bf16.mxu0 %v165
  %796 = vmatpush1.bf16.msra.mxu0 %v164
  %797 = vmatprep.subr.bf16.mxu0 0
  %798 = vmatpush1.bf16.msra.mxu0 0
  %799 = vmatprep.subr.bf16.mxu0 0
  %800 = vmatpush1.bf16.msra.mxu0 0
  %801 = vmatprep.subr.bf16.mxu0 0
  %802 = vmatpush1.bf16.msra.mxu0 0
  %803 = vmatprep.subr.bf16.mxu0 0
  %804 = vmatpush1.bf16.msra.mxu0 0
  %805 = vmatprep.subr.bf16.mxu0 0
  %806 = vmatpush1.bf16.msra.mxu0 0
  %807 = vmatprep.subr.bf16.mxu0 0
  %808 = vmatpush1.bf16.msra.mxu0 0
  %809 = vmatprep.subr.bf16.mxu0 0
  %810 = vmatpush1.bf16.msra.mxu0 0
  %811 = vmatprep.subr.bf16.mxu0 0
  %812 = vmatpush1.bf16.msra.mxu0 0
  %813 = vmatprep.mubr.bf16.mxu0 0
  %814 = vmatmul.mubr.bf16.gmra.mrb[0].mxu0 %v780
  %v815 = vpop.f32.mrb[0].mxu0
  %v816 = vadd.f32 0.0, %v815
  %v817 = vpop.f32.mrb[0].mxu0
  %v818 = vadd.f32 0.0, %v817
  %v819 = vpop.f32.mrb[0].mxu0
  %v820 = vpop.f32.mrb[0].mxu0
  %821 = vdwg.mxu0
  %822 = vmatprep.subr.bf16.mxu0 0
  %823 = vmatpush1.bf16.msra.mxu0 %v145
  %824 = vmatprep.subr.bf16.mxu0 0
  %825 = vmatpush1.bf16.msra.mxu0 %v148
  %826 = vmatprep.subr.bf16.mxu0 0
  %827 = vmatpush1.bf16.msra.mxu0 %v151
  %828 = vmatprep.subr.bf16.mxu0 0
  %829 = vmatpush1.bf16.msra.mxu0 %v154
  %830 = vmatprep.subr.bf16.mxu0 0
  %831 = vmatpush1.bf16.msra.mxu0 %v157
  %832 = vmatprep.subr.bf16.mxu0 0
  %833 = vmatpush1.bf16.msra.mxu0 %v160
  %834 = vmatprep.subr.bf16.mxu0 0
  %835 = vmatpush1.bf16.msra.mxu0 %v163
  %836 = vmatprep.subr.bf16.mxu0 0
  %837 = vmatpush1.bf16.msra.mxu0 %v166
  %838 = vmatprep.subr.bf16.mxu0 0
  %839 = vmatpush1.bf16.msra.mxu0 0
  %840 = vmatprep.subr.bf16.mxu0 0
  %841 = vmatpush1.bf16.msra.mxu0 0
  %842 = vmatprep.subr.bf16.mxu0 0
  %843 = vmatpush1.bf16.msra.mxu0 0
  %844 = vmatprep.subr.bf16.mxu0 0
  %845 = vmatpush1.bf16.msra.mxu0 0
  %846 = vmatprep.subr.bf16.mxu0 0
  %847 = vmatpush1.bf16.msra.mxu0 0
  %848 = vmatprep.subr.bf16.mxu0 0
  %849 = vmatpush1.bf16.msra.mxu0 0
  %850 = vmatprep.subr.bf16.mxu0 0
  %851 = vmatpush1.bf16.msra.mxu0 0
  %852 = vmatprep.subr.bf16.mxu0 0
  %853 = vmatpush1.bf16.msra.mxu0 0
  %854 = vmatprep.mubr.bf16.mxu0 0
  %855 = vmatmul.mubr.bf16.gmra.mrb[0].mxu0 %v780
  %v856 = vpop.f32.mrb[0].mxu0
  %v857 = vadd.f32 0.0, %v856
  %v858 = vpop.f32.mrb[0].mxu0
  %v859 = vpop.f32.mrb[0].mxu0
  %v860 = vpop.f32.mrb[0].mxu0
  %861 = vdwg.mxu0
  %v862 = vadd.f32 %v777, %v816
  %v863 = vxor.u32 %v862, 2147483648
  %v864 = vmul.f32 %v863, 1.442695
  %v865 = vpow.pop %v864
  %v866 = vadd.f32 %v865, 1.0
  %v867 = vrcp.pop %v866
  %v868 = vmul.f32 1.0, %v867
  %v869 = vadd.f32 %v778, %v818
  %v870 = vxor.u32 %v869, 2147483648
  %v871 = vmul.f32 %v870, 1.442695
  %v872 = vpow.pop %v871
  %v873 = vadd.f32 %v872, 1.0
  %v874 = vrcp.pop %v873
  %v875 = vmul.f32 1.0, %v874
  %v876 = vadd.f32 %v857, %v290
  %v877 = vmul.f32 %v868, %v876
  %v878 = vadd.f32 %v779, %v877
  %v879 = vtanh.pop %v878
  %v880 = vsub.f32 1.0, %v875
  %v881 = vmul.f32 %v880, %v879
  %v882 = vmul.f32 %v875, %v775
  %v883 = vadd.f32 %v881, %v882
  %s884 = sadd.s32 %s57, 5
  %v885 = vstv %s884
  %vm886 = vcmp.gt.s32.totalorder %v23, %v885
  %v887 = vsel %vm886, 1, 0
  %888 = vset.pattern.permute.xlu0 0
  %889 = vperm.xlu0 %888, %v887
  %v890 = vpop.permute.xlu0 %889
  %vm891 = vcmp.eq.s32.totalorder %v890, 1
  %v892 = vsel %vm891, %v883, %v775
  %s893 = scalar_lea.vmem %s0, 144
  %v894 = vld [vmem:[%s893] sm:$0xff]
  %v895 = vld [vmem:[%s893 + $0x8] sm:$0xff]
  %v896 = vld [vmem:[%s893 + $0x10] sm:$0xff]
  %v897 = vpack.c.bf16 %v892, %v892
  %898 = vmatprep.subr.bf16.mxu0 %v144
  %899 = vmatpush1.bf16.msra.mxu0 %v143
  %900 = vmatprep.subr.bf16.mxu0 %v147
  %901 = vmatpush1.bf16.msra.mxu0 %v146
  %902 = vmatprep.subr.bf16.mxu0 %v150
  %903 = vmatpush1.bf16.msra.mxu0 %v149
  %904 = vmatprep.subr.bf16.mxu0 %v153
  %905 = vmatpush1.bf16.msra.mxu0 %v152
  %906 = vmatprep.subr.bf16.mxu0 %v156
  %907 = vmatpush1.bf16.msra.mxu0 %v155
  %908 = vmatprep.subr.bf16.mxu0 %v159
  %909 = vmatpush1.bf16.msra.mxu0 %v158
  %910 = vmatprep.subr.bf16.mxu0 %v162
  %911 = vmatpush1.bf16.msra.mxu0 %v161
  %912 = vmatprep.subr.bf16.mxu0 %v165
  %913 = vmatpush1.bf16.msra.mxu0 %v164
  %914 = vmatprep.subr.bf16.mxu0 0
  %915 = vmatpush1.bf16.msra.mxu0 0
  %916 = vmatprep.subr.bf16.mxu0 0
  %917 = vmatpush1.bf16.msra.mxu0 0
  %918 = vmatprep.subr.bf16.mxu0 0
  %919 = vmatpush1.bf16.msra.mxu0 0
  %920 = vmatprep.subr.bf16.mxu0 0
  %921 = vmatpush1.bf16.msra.mxu0 0
  %922 = vmatprep.subr.bf16.mxu0 0
  %923 = vmatpush1.bf16.msra.mxu0 0
  %924 = vmatprep.subr.bf16.mxu0 0
  %925 = vmatpush1.bf16.msra.mxu0 0
  %926 = vmatprep.subr.bf16.mxu0 0
  %927 = vmatpush1.bf16.msra.mxu0 0
  %928 = vmatprep.subr.bf16.mxu0 0
  %929 = vmatpush1.bf16.msra.mxu0 0
  %930 = vmatprep.mubr.bf16.mxu0 0
  %931 = vmatmul.mubr.bf16.gmra.mrb[0].mxu0 %v897
  %v932 = vpop.f32.mrb[0].mxu0
  %v933 = vadd.f32 0.0, %v932
  %v934 = vpop.f32.mrb[0].mxu0
  %v935 = vadd.f32 0.0, %v934
  %v936 = vpop.f32.mrb[0].mxu0
  %v937 = vpop.f32.mrb[0].mxu0
  %938 = vdwg.mxu0
  %939 = vmatprep.subr.bf16.mxu0 0
  %940 = vmatpush1.bf16.msra.mxu0 %v145
  %941 = vmatprep.subr.bf16.mxu0 0
  %942 = vmatpush1.bf16.msra.mxu0 %v148
  %943 = vmatprep.subr.bf16.mxu0 0
  %944 = vmatpush1.bf16.msra.mxu0 %v151
  %945 = vmatprep.subr.bf16.mxu0 0
  %946 = vmatpush1.bf16.msra.mxu0 %v154
  %947 = vmatprep.subr.bf16.mxu0 0
  %948 = vmatpush1.bf16.msra.mxu0 %v157
  %949 = vmatprep.subr.bf16.mxu0 0
  %950 = vmatpush1.bf16.msra.mxu0 %v160
  %951 = vmatprep.subr.bf16.mxu0 0
  %952 = vmatpush1.bf16.msra.mxu0 %v163
  %953 = vmatprep.subr.bf16.mxu0 0
  %954 = vmatpush1.bf16.msra.mxu0 %v166
  %955 = vmatprep.subr.bf16.mxu0 0
  %956 = vmatpush1.bf16.msra.mxu0 0
  %957 = vmatprep.subr.bf16.mxu0 0
  %958 = vmatpush1.bf16.msra.mxu0 0
  %959 = vmatprep.subr.bf16.mxu0 0
  %960 = vmatpush1.bf16.msra.mxu0 0
  %961 = vmatprep.subr.bf16.mxu0 0
  %962 = vmatpush1.bf16.msra.mxu0 0
  %963 = vmatprep.subr.bf16.mxu0 0
  %964 = vmatpush1.bf16.msra.mxu0 0
  %965 = vmatprep.subr.bf16.mxu0 0
  %966 = vmatpush1.bf16.msra.mxu0 0
  %967 = vmatprep.subr.bf16.mxu0 0
  %968 = vmatpush1.bf16.msra.mxu0 0
  %969 = vmatprep.subr.bf16.mxu0 0
  %970 = vmatpush1.bf16.msra.mxu0 0
  %971 = vmatprep.mubr.bf16.mxu0 0
  %972 = vmatmul.mubr.bf16.gmra.mrb[0].mxu0 %v897
  %v973 = vpop.f32.mrb[0].mxu0
  %v974 = vadd.f32 0.0, %v973
  %v975 = vpop.f32.mrb[0].mxu0
  %v976 = vpop.f32.mrb[0].mxu0
  %v977 = vpop.f32.mrb[0].mxu0
  %978 = vdwg.mxu0
  %v979 = vadd.f32 %v894, %v933
  %v980 = vxor.u32 %v979, 2147483648
  %v981 = vmul.f32 %v980, 1.442695
  %v982 = vpow.pop %v981
  %v983 = vadd.f32 %v982, 1.0
  %v984 = vrcp.pop %v983
  %v985 = vmul.f32 1.0, %v984
  %v986 = vadd.f32 %v895, %v935
  %v987 = vxor.u32 %v986, 2147483648
  %v988 = vmul.f32 %v987, 1.442695
  %v989 = vpow.pop %v988
  %v990 = vadd.f32 %v989, 1.0
  %v991 = vrcp.pop %v990
  %v992 = vmul.f32 1.0, %v991
  %v993 = vadd.f32 %v974, %v290
  %v994 = vmul.f32 %v985, %v993
  %v995 = vadd.f32 %v896, %v994
  %v996 = vtanh.pop %v995
  %v997 = vsub.f32 1.0, %v992
  %v998 = vmul.f32 %v997, %v996
  %v999 = vmul.f32 %v992, %v892
  %v1000 = vadd.f32 %v998, %v999
  %s1001 = sadd.s32 %s57, 6
  %v1002 = vstv %s1001
  %vm1003 = vcmp.gt.s32.totalorder %v23, %v1002
  %v1004 = vsel %vm1003, 1, 0
  %1005 = vset.pattern.permute.xlu0 0
  %1006 = vperm.xlu0 %1005, %v1004
  %v1007 = vpop.permute.xlu0 %1006
  %vm1008 = vcmp.eq.s32.totalorder %v1007, 1
  %v1009 = vsel %vm1008, %v1000, %v892
  %s1010 = scalar_lea.vmem %s0, 168
  %v1011 = vld [vmem:[%s1010] sm:$0xff]
  %v1012 = vld [vmem:[%s1010 + $0x8] sm:$0xff]
  %v1013 = vld [vmem:[%s1010 + $0x10] sm:$0xff]
  %v1014 = vpack.c.bf16 %v1009, %v1009
  %1015 = vmatprep.subr.bf16.mxu0 %v144
  %1016 = vmatpush1.bf16.msra.mxu0 %v143
  %1017 = vmatprep.subr.bf16.mxu0 %v147
  %1018 = vmatpush1.bf16.msra.mxu0 %v146
  %1019 = vmatprep.subr.bf16.mxu0 %v150
  %1020 = vmatpush1.bf16.msra.mxu0 %v149
  %1021 = vmatprep.subr.bf16.mxu0 %v153
  %1022 = vmatpush1.bf16.msra.mxu0 %v152
  %1023 = vmatprep.subr.bf16.mxu0 %v156
  %1024 = vmatpush1.bf16.msra.mxu0 %v155
  %1025 = vmatprep.subr.bf16.mxu0 %v159
  %1026 = vmatpush1.bf16.msra.mxu0 %v158
  %1027 = vmatprep.subr.bf16.mxu0 %v162
  %1028 = vmatpush1.bf16.msra.mxu0 %v161
  %1029 = vmatprep.subr.bf16.mxu0 %v165
  %1030 = vmatpush1.bf16.msra.mxu0 %v164
  %1031 = vmatprep.subr.bf16.mxu0 0
  %1032 = vmatpush1.bf16.msra.mxu0 0
  %1033 = vmatprep.subr.bf16.mxu0 0
  %1034 = vmatpush1.bf16.msra.mxu0 0
  %1035 = vmatprep.subr.bf16.mxu0 0
  %1036 = vmatpush1.bf16.msra.mxu0 0
  %1037 = vmatprep.subr.bf16.mxu0 0
  %1038 = vmatpush1.bf16.msra.mxu0 0
  %1039 = vmatprep.subr.bf16.mxu0 0
  %1040 = vmatpush1.bf16.msra.mxu0 0
  %1041 = vmatprep.subr.bf16.mxu0 0
  %1042 = vmatpush1.bf16.msra.mxu0 0
  %1043 = vmatprep.subr.bf16.mxu0 0
  %1044 = vmatpush1.bf16.msra.mxu0 0
  %1045 = vmatprep.subr.bf16.mxu0 0
  %1046 = vmatpush1.bf16.msra.mxu0 0
  %1047 = vmatprep.mubr.bf16.mxu0 0
  %1048 = vmatmul.mubr.bf16.gmra.mrb[0].mxu0 %v1014
  %v1049 = vpop.f32.mrb[0].mxu0
  %v1050 = vadd.f32 0.0, %v1049
  %v1051 = vpop.f32.mrb[0].mxu0
  %v1052 = vadd.f32 0.0, %v1051
  %v1053 = vpop.f32.mrb[0].mxu0
  %v1054 = vpop.f32.mrb[0].mxu0
  %1055 = vdwg.mxu0
  %1056 = vmatprep.subr.bf16.mxu0 0
  %1057 = vmatpush1.bf16.msra.mxu0 %v145
  %1058 = vmatprep.subr.bf16.mxu0 0
  %1059 = vmatpush1.bf16.msra.mxu0 %v148
  %1060 = vmatprep.subr.bf16.mxu0 0
  %1061 = vmatpush1.bf16.msra.mxu0 %v151
  %1062 = vmatprep.subr.bf16.mxu0 0
  %1063 = vmatpush1.bf16.msra.mxu0 %v154
  %1064 = vmatprep.subr.bf16.mxu0 0
  %1065 = vmatpush1.bf16.msra.mxu0 %v157
  %1066 = vmatprep.subr.bf16.mxu0 0
  %1067 = vmatpush1.bf16.msra.mxu0 %v160
  %1068 = vmatprep.subr.bf16.mxu0 0
  %1069 = vmatpush1.bf16.msra.mxu0 %v163
  %1070 = vmatprep.subr.bf16.mxu0 0
  %1071 = vmatpush1.bf16.msra.mxu0 %v166
  %1072 = vmatprep.subr.bf16.mxu0 0
  %1073 = vmatpush1.bf16.msra.mxu0 0
  %1074 = vmatprep.subr.bf16.mxu0 0
  %1075 = vmatpush1.bf16.msra.mxu0 0
  %1076 = vmatprep.subr.bf16.mxu0 0
  %1077 = vmatpush1.bf16.msra.mxu0 0
  %1078 = vmatprep.subr.bf16.mxu0 0
  %1079 = vmatpush1.bf16.msra.mxu0 0
  %1080 = vmatprep.subr.bf16.mxu0 0
  %1081 = vmatpush1.bf16.msra.mxu0 0
  %1082 = vmatprep.subr.bf16.mxu0 0
  %1083 = vmatpush1.bf16.msra.mxu0 0
  %1084 = vmatprep.subr.bf16.mxu0 0
  %1085 = vmatpush1.bf16.msra.mxu0 0
  %1086 = vmatprep.subr.bf16.mxu0 0
  %1087 = vmatpush1.bf16.msra.mxu0 0
  %1088 = vmatprep.mubr.bf16.mxu0 0
  %1089 = vmatmul.mubr.bf16.gmra.mrb[0].mxu0 %v1014
  %v1090 = vpop.f32.mrb[0].mxu0
  %v1091 = vadd.f32 0.0, %v1090
  %v1092 = vpop.f32.mrb[0].mxu0
  %v1093 = vpop.f32.mrb[0].mxu0
  %v1094 = vpop.f32.mrb[0].mxu0
  %1095 = vdwg.mxu0
  %v1096 = vadd.f32 %v1011, %v1050
  %v1097 = vxor.u32 %v1096, 2147483648
  %v1098 = vmul.f32 %v1097, 1.442695
  %v1099 = vpow.pop %v1098
  %v1100 = vadd.f32 %v1099, 1.0
  %v1101 = vrcp.pop %v1100
  %v1102 = vmul.f32 1.0, %v1101
  %v1103 = vadd.f32 %v1012, %v1052
  %v1104 = vxor.u32 %v1103, 2147483648
  %v1105 = vmul.f32 %v1104, 1.442695
  %v1106 = vpow.pop %v1105
  %v1107 = vadd.f32 %v1106, 1.0
  %v1108 = vrcp.pop %v1107
  %v1109 = vmul.f32 1.0, %v1108
  %v1110 = vadd.f32 %v1091, %v290
  %v1111 = vmul.f32 %v1102, %v1110
  %v1112 = vadd.f32 %v1013, %v1111
  %v1113 = vtanh.pop %v1112
  %v1114 = vsub.f32 1.0, %v1109
  %v1115 = vmul.f32 %v1114, %v1113
  %v1116 = vmul.f32 %v1109, %v1009
  %v1117 = vadd.f32 %v1115, %v1116
  %s1118 = sadd.s32 %s57, 7
  %v1119 = vstv %s1118
  %vm1120 = vcmp.gt.s32.totalorder %v23, %v1119
  %v1121 = vsel %vm1120, 1, 0
  %1122 = vset.pattern.permute.xlu0 0
  %1123 = vperm.xlu0 %1122, %v1121
  %v1124 = vpop.permute.xlu0 %1123
  %vm1125 = vcmp.eq.s32.totalorder %v1124, 1
  %v1126 = vsel %vm1125, %v1117, %v1009
  %1127 = vst [vmem:[#allocation2] sm:$0xff] %v1126
  // Predicated region
  $region22: #{multitask_classification_forward.4} parent=0 // pred_check
    %p1128 = pneg %p18
  $region23: #{multitask_classification_forward.4} parent=0 // pred_check_branch
    %1130 = sbr.rel (%p1128) target = $region25
  $region24: #{multitask_classification_forward.4} parent=0 // pred_region
    %v1131 = vld [vmem:[#allocation2] sm:$0xff]
    %1132 = vst [vmem:[%s4] sm:$0xff] %v1131
  $region25: #{multitask_classification_forward.4} parent=0 // pred_fallthru
    _
  // Predicated region
  $region26: #{multitask_classification_forward.4} parent=0 // pred_check
    _
  $region27: #{multitask_classification_forward.4} parent=0 // pred_check_branch
    %1134 = sbr.rel (0) target = $region29
  $region28: #{multitask_classification_forward.4} parent=0 // pred_region
    _
  $region29: #{multitask_classification_forward.4} parent=0 // pred_fallthru
    _
  // Predicated region
  $region30: #{multitask_classification_forward.4} parent=0 // pred_check
    _
  $region31: #{multitask_classification_forward.4} parent=0 // pred_check_branch
    %1136 = sbr.rel (0) target = $region33
  $region32: #{multitask_classification_forward.4} parent=0 // pred_region
    _
  $region33: #{multitask_classification_forward.4} parent=0 // pred_fallthru
    _

</llo_original>
